<compile_context>
chip_gen: v6e
topology: v6e:2x2x1
jax: 0.10.0
libtpu: 0.0.40
codegen_flags: <defaults>
</compile_context>

<pallas_src>
import functools
import math

import numpy as np
import jax
import jax.numpy as jnp
from jax import lax
from jax.experimental import pallas as pl
from jax.experimental.pallas import tpu as pltpu


def _pick_head_block(num_heads, head_dim, target_lanes=256):
    """Smallest divisor hb of num_heads with hb*head_dim >= target_lanes, else all heads."""
    for hb in range(1, num_heads + 1):
        if num_heads % hb == 0 and hb * head_dim >= target_lanes:
            return hb
    return num_heads


def _attention_kernel(x_ref, wqkv_ref, bqkv_ref, wo_ref, bo_ref,
                      out_ref, acc_ref, ctx_ref,
                      *, head_block, head_dim, approx_recip):
    g = pl.program_id(1)

    @pl.when(g == 0)
    def _():
        acc_ref[...] = jnp.zeros_like(acc_ref)

    x = x_ref[...]                                   # (S, H), compute dtype
    dt = x.dtype
    D = head_block * head_dim                        # lanes per Q/K/V group

    # Fused Q|K|V projection for this head block: one wide MXU matmul
    # (N = 3*HB*hd).  Scale 1/sqrt(hd) is already folded into the Q columns.
    w = wqkv_ref[g]                                  # (H, 3D), resident in VMEM
    bias_qkv = bqkv_ref[g]                           # (1, 3D) f32
    proj = (jnp.dot(x, w, preferred_element_type=jnp.float32)
            + bias_qkv).astype(dt)                   # (S, 3D)

    # Attention per head within the block (scores/ctx are the minority FLOPs;
    # projections above and out-projection below carry the full MXU width).
    for h in range(head_block):                      # static unroll
        lo = h * head_dim
        hi = lo + head_dim
        q = proj[:, lo:hi]                           # (S, hd)
        k = proj[:, D + lo:D + hi]                   # (S, hd)
        v = proj[:, 2 * D + lo:2 * D + hi]           # (S, hd)

        # q @ k^T without an explicit transpose (contract last dims).
        s = lax.dot_general(q, k, dimension_numbers=(((1,), (1,)), ((), ())),
                            preferred_element_type=jnp.float32)   # (S, S) f32

        # Softmax in f32.
        m = jnp.max(s, axis=-1, keepdims=True)
        e = jnp.exp(s - m)
        den = jnp.sum(e, axis=-1, keepdims=True)
        if approx_recip:
            p = (e * pl.reciprocal(den, approx=True)).astype(dt)
        else:
            p = (e / den).astype(dt)

        ctx_ref[:, lo:hi] = jnp.dot(p, v,
                                    preferred_element_type=jnp.float32).astype(dt)

    # One deep out-projection matmul per head block (K = HB*hd, N = H),
    # accumulated into the f32 scratch (single RMW per block).
    acc_ref[...] += jnp.dot(ctx_ref[...], wo_ref[g],
                            preferred_element_type=jnp.float32)   # (S, H)

    @pl.when(g == pl.num_programs(1) - 1)
    def _():
        out_ref[...] = (acc_ref[...] + bo_ref[...]).astype(out_ref.dtype)


def attention_pallas(x, wq, bq, wk, bk, wv, bv, wo, bo, *, num_heads,
                     compute_dtype=None, target_head_lanes=256):
    """x: (B, S, H); weights stored as (in_features, out_features): y = x @ W + b."""
    B, S, H = x.shape
    nh = num_heads
    hd = H // nh
    hb = _pick_head_block(nh, hd, target_head_lanes)
    G = nh // hb                                     # head blocks
    D = hb * hd
    scale = 1.0 / math.sqrt(hd)

    cdt = compute_dtype if compute_dtype is not None else x.dtype
    f32 = jnp.float32
    approx_recip = np.dtype(cdt) == np.dtype(jnp.bfloat16)

    # Fold the softmax scale into the query projection (wrapper-side cleanup).
    wq_s = wq.astype(f32) * scale
    bq_s = bq.astype(f32) * scale

    def to_blocks(w):                                # (H, H) -> (G, H, D)
        return w.reshape(H, G, D).transpose(1, 0, 2)

    # Fused per-head-block QKV weights/biases: last dim = [Q cols | K cols | V cols].
    wqkv = jnp.concatenate([to_blocks(wq_s),
                            to_blocks(wk.astype(f32)),
                            to_blocks(wv.astype(f32))], axis=-1).astype(cdt)   # (G, H, 3D)
    bqkv = jnp.concatenate([bq_s.reshape(G, D),
                            bk.astype(f32).reshape(G, D),
                            bv.astype(f32).reshape(G, D)],
                           axis=-1).reshape(G, 1, 3 * D).astype(f32)           # (G, 1, 3D)
    wo_b = wo.reshape(G, D, H).astype(cdt)                                     # (G, D, H)
    bo_2 = bo.reshape(1, H).astype(f32)
    x_c = x.astype(cdt)

    kernel = functools.partial(_attention_kernel,
                               head_block=hb, head_dim=hd,
                               approx_recip=approx_recip)

    x_spec    = pl.BlockSpec((None, S, H), lambda b, g: (b, 0, 0))
    # Constant index maps -> weights fetched once and kept resident in VMEM.
    wqkv_spec = pl.BlockSpec((G, H, 3 * D), lambda b, g: (0, 0, 0))
    bqkv_spec = pl.BlockSpec((G, 1, 3 * D), lambda b, g: (0, 0, 0))
    wo_spec   = pl.BlockSpec((G, D, H),     lambda b, g: (0, 0, 0))
    bo_spec   = pl.BlockSpec((1, H),        lambda b, g: (0, 0))
    out_spec  = pl.BlockSpec((None, S, H),  lambda b, g: (b, 0, 0))

    return pl.pallas_call(
        kernel,
        out_shape=jax.ShapeDtypeStruct((B, S, H), x.dtype),
        grid_spec=pltpu.PrefetchScalarGridSpec(
            num_scalar_prefetch=0,
            grid=(B, G),
            in_specs=[x_spec, wqkv_spec, bqkv_spec, wo_spec, bo_spec],
            out_specs=out_spec,
            scratch_shapes=[pltpu.VMEM((S, H), jnp.float32),   # out-proj accumulator
                            pltpu.VMEM((S, D), cdt)],          # merged per-block context
        ),
        compiler_params=pltpu.CompilerParams(
            dimension_semantics=("parallel", "arbitrary"),
            vmem_limit_bytes=48 * 1024 * 1024),
    )(x_c, wqkv, bqkv, wo_b, bo_2)


def attention_reference(x, wq, bq, wk, bk, wv, bv, wo, bo, *, num_heads):
    """Plain JAX reference matching the PyTorch forward (eval mode)."""
    B, S, H = x.shape
    hd = H // num_heads
    xf = x.astype(jnp.float32)

    def split_heads(t):  # (B, S, H) -> (B, nh, S, hd)
        return t.reshape(B, S, num_heads, hd).transpose(0, 2, 1, 3)

    q = split_heads(xf @ wq + bq)
    k = split_heads(xf @ wk + bk)
    v = split_heads(xf @ wv + bv)

    scores = jnp.einsum('bhqd,bhkd->bhqk', q, k) / math.sqrt(hd)
    probs = jax.nn.softmax(scores, axis=-1)
    ctx = jnp.einsum('bhqk,bhkd->bhqd', probs, v)
    ctx = ctx.transpose(0, 2, 1, 3).reshape(B, S, H)
    return (ctx @ wo + bo).astype(x.dtype)


if __name__ == "__main__":
    # Small config: batch=2, seq=8, hidden=32, heads=4 (head_dim=8)
    B, S, H, NH = 2, 8, 32, 4

    key = jax.random.PRNGKey(0)
    keys = jax.random.split(key, 9)

    x = jax.random.normal(keys[0], (B, S, H), dtype=jnp.float32)

    init = 0.05
    wq = jax.random.normal(keys[1], (H, H), dtype=jnp.float32) * init
    bq = jax.random.normal(keys[2], (H,), dtype=jnp.float32) * init
    wk = jax.random.normal(keys[3], (H, H), dtype=jnp.float32) * init
    bk = jax.random.normal(keys[4], (H,), dtype=jnp.float32) * init
    wv = jax.random.normal(keys[5], (H, H), dtype=jnp.float32) * init
    bv = jax.random.normal(keys[6], (H,), dtype=jnp.float32) * init
    wo = jax.random.normal(keys[7], (H, H), dtype=jnp.float32) * init
    bo = jax.random.normal(keys[8], (H,), dtype=jnp.float32) * init

    ref = attention_reference(x, wq, bq, wk, bk, wv, bv, wo, bo, num_heads=NH)

    # f32 compute path (exact softmax division) — matches the PyTorch eval forward.
    out = attention_pallas(x, wq, bq, wk, bk, wv, bv, wo, bo, num_heads=NH)
    out = jax.block_until_ready(out)
    assert out.shape == (B, S, H)
    assert jnp.allclose(out, ref, atol=1e-3, rtol=1e-3), "f32 mismatch vs reference"

    # bf16 compute path (MXU-native dtype); output stays in x.dtype, looser tolerance.
    out_bf16 = attention_pallas(x, wq, bq, wk, bk, wv, bv, wo, bo, num_heads=NH,
                                compute_dtype=jnp.bfloat16)
    out_bf16 = jax.block_until_ready(out_bf16)
    assert jnp.allclose(out_bf16, ref, atol=5e-2, rtol=5e-2), "bf16 mismatch vs reference"

    print("KERNEL_OK")
</pallas_src>

<mosaic_0001>
module attributes {stable_mosaic.version = 11 : i64} {
  func.func @_attention_kernel(%arg0: i32, %arg1: i32, %arg2: memref<1x8x32xf32, #tpu.memory_space<vmem>>, %arg3: memref<1x32x96xf32, #tpu.memory_space<vmem>>, %arg4: memref<1x1x96xf32, #tpu.memory_space<vmem>>, %arg5: memref<1x32x32xf32, #tpu.memory_space<vmem>>, %arg6: memref<1x32xf32, #tpu.memory_space<vmem>>, %arg7: memref<1x8x32xf32, #tpu.memory_space<vmem>>, %arg8: memref<8x32xf32, #tpu.memory_space<vmem>>, %arg9: memref<8x32xf32, #tpu.memory_space<vmem>>) attributes {dimension_semantics = [#tpu.dimension_semantics<parallel>, #tpu.dimension_semantics<arbitrary>], iteration_bounds = array<i64: 2, 1>, scalar_prefetch = 0 : i64, scratch_operands = 2 : i64, tpu.core_type = #tpu.core_type<tc>, window_params = [{transform_indices = @transform_0, window_bounds = array<i64: 1, 8, 32>}, {pipeline_mode = #tpu.pipeline_mode<synchronous>, transform_indices = @transform_1, window_bounds = array<i64: 1, 32, 96>}, {pipeline_mode = #tpu.pipeline_mode<synchronous>, transform_indices = @transform_2, window_bounds = array<i64: 1, 1, 96>}, {pipeline_mode = #tpu.pipeline_mode<synchronous>, transform_indices = @transform_3, window_bounds = array<i64: 1, 32, 32>}, {pipeline_mode = #tpu.pipeline_mode<synchronous>, transform_indices = @transform_4, window_bounds = array<i64: 1, 32>}, {transform_indices = @transform_5, window_bounds = array<i64: 1, 8, 32>}]} {
    %c0_i32 = arith.constant 0 : i32
    %0 = arith.cmpi eq, %arg1, %c0_i32 : i32
    %1 = arith.extui %0 : i1 to i32
    %c0_i32_0 = arith.constant 0 : i32
    %2 = arith.cmpi ne, %1, %c0_i32_0 : i32
    scf.if %2 {
      %cst_39 = arith.constant 0.000000e+00 : f32
      %85 = vector.broadcast %cst_39 : f32 to vector<8x32xf32>
      %c0_40 = arith.constant 0 : index
      %c0_41 = arith.constant 0 : index
      %86 = vector.load %arg8[%c0_40, %c0_41] : memref<8x32xf32, #tpu.memory_space<vmem>>, vector<8x32xf32>
      tpu.vector_store %arg8[%c0_40, %c0_41], %85 {strides = array<i32>} : memref<8x32xf32, #tpu.memory_space<vmem>>, vector<8x32xf32>,
    } else {
    }
    %c0 = arith.constant 0 : index
    %c0_1 = arith.constant 0 : index
    %c0_2 = arith.constant 0 : index
    %3 = vector.load %arg2[%c0, %c0_1, %c0_2] : memref<1x8x32xf32, #tpu.memory_space<vmem>>, vector<1x8x32xf32>
    %4 = vector.shape_cast %3 : vector<1x8x32xf32> to vector<8x32xf32>
    %5 = arith.index_cast %arg1 : i32 to index
    %c0_3 = arith.constant 0 : index
    %c0_4 = arith.constant 0 : index
    %6 = vector.load %arg3[%5, %c0_3, %c0_4] : memref<1x32x96xf32, #tpu.memory_space<vmem>>, vector<1x32x96xf32>
    %7 = vector.shape_cast %6 : vector<1x32x96xf32> to vector<32x96xf32>
    %8 = arith.index_cast %arg1 : i32 to index
    %c0_5 = arith.constant 0 : index
    %c0_6 = arith.constant 0 : index
    %9 = vector.load %arg4[%8, %c0_5, %c0_6] : memref<1x1x96xf32, #tpu.memory_space<vmem>>, vector<1x1x96xf32>
    %10 = vector.shape_cast %9 : vector<1x1x96xf32> to vector<1x96xf32>
    %cst = arith.constant dense<0.000000e+00> : vector<8x96xf32>
    %11 = tpu.matmul %4, %7, %cst {dimension_numbers = #tpu.dot_dimension_numbers<[1], [0], [0], [1], [0, 0, 1, 1], [], []>} : vector<8x32xf32>, vector<32x96xf32>, vector<8x96xf32> -> vector<8x96xf32>
    %12 = vector.broadcast %10 : vector<1x96xf32> to vector<8x96xf32>
    %13 = arith.addf %11, %12 : vector<8x96xf32>
    %14 = vector.extract_strided_slice %13 {offsets = [0, 0], sizes = [8, 8], strides = [1, 1]} : vector<8x96xf32> to vector<8x8xf32>
    %15 = vector.extract_strided_slice %13 {offsets = [0, 32], sizes = [8, 8], strides = [1, 1]} : vector<8x96xf32> to vector<8x8xf32>
    %16 = vector.extract_strided_slice %13 {offsets = [0, 64], sizes = [8, 8], strides = [1, 1]} : vector<8x96xf32> to vector<8x8xf32>
    %cst_7 = arith.constant dense<0.000000e+00> : vector<8x8xf32>
    %17 = tpu.matmul %14, %15, %cst_7 {dimension_numbers = #tpu.dot_dimension_numbers<[1], [1], [0], [0], [0, 0, 1, 0], [], []>} : vector<8x8xf32>, vector<8x8xf32>, vector<8x8xf32> -> vector<8x8xf32>
    %cst_8 = arith.constant dense<0xFF800000> : vector<8xf32>
    %18 = vector.multi_reduction <maximumf>, %17, %cst_8 [1] : vector<8x8xf32> to vector<8xf32>
    %19 = vector.shape_cast %18 : vector<8xf32> to vector<8x1xf32>
    %20 = vector.broadcast %19 : vector<8x1xf32> to vector<8x8xf32>
    %21 = arith.subf %17, %20 : vector<8x8xf32>
    %22 = math.exp %21 : vector<8x8xf32>
    %cst_9 = arith.constant dense<0.000000e+00> : vector<8xf32>
    %23 = vector.multi_reduction <add>, %22, %cst_9 [1] : vector<8x8xf32> to vector<8xf32>
    %24 = vector.shape_cast %23 : vector<8xf32> to vector<8x1xf32>
    %25 = vector.broadcast %24 : vector<8x1xf32> to vector<8x8xf32>
    %26 = arith.divf %22, %25 : vector<8x8xf32>
    %cst_10 = arith.constant dense<0.000000e+00> : vector<8x8xf32>
    %27 = tpu.matmul %26, %16, %cst_10 {dimension_numbers = #tpu.dot_dimension_numbers<[1], [0], [0], [1], [0, 0, 1, 1], [], []>} : vector<8x8xf32>, vector<8x8xf32>, vector<8x8xf32> -> vector<8x8xf32>
    %c0_11 = arith.constant 0 : index
    %c0_12 = arith.constant 0 : index
    %28 = vector.load %arg9[%c0_11, %c0_12] : memref<8x32xf32, #tpu.memory_space<vmem>>, vector<8x8xf32>
    tpu.vector_store %arg9[%c0_11, %c0_12], %27 {strides = array<i32>} : memref<8x32xf32, #tpu.memory_space<vmem>>, vector<8x8xf32>,
    %29 = vector.extract_strided_slice %13 {offsets = [0, 8], sizes = [8, 8], strides = [1, 1]} : vector<8x96xf32> to vector<8x8xf32>
    %30 = vector.extract_strided_slice %13 {offsets = [0, 40], sizes = [8, 8], strides = [1, 1]} : vector<8x96xf32> to vector<8x8xf32>
    %31 = vector.extract_strided_slice %13 {offsets = [0, 72], sizes = [8, 8], strides = [1, 1]} : vector<8x96xf32> to vector<8x8xf32>
    %cst_13 = arith.constant dense<0.000000e+00> : vector<8x8xf32>
    %32 = tpu.matmul %29, %30, %cst_13 {dimension_numbers = #tpu.dot_dimension_numbers<[1], [1], [0], [0], [0, 0, 1, 0], [], []>} : vector<8x8xf32>, vector<8x8xf32>, vector<8x8xf32> -> vector<8x8xf32>
    %cst_14 = arith.constant dense<0xFF800000> : vector<8xf32>
    %33 = vector.multi_reduction <maximumf>, %32, %cst_14 [1] : vector<8x8xf32> to vector<8xf32>
    %34 = vector.shape_cast %33 : vector<8xf32> to vector<8x1xf32>
    %35 = vector.broadcast %34 : vector<8x1xf32> to vector<8x8xf32>
    %36 = arith.subf %32, %35 : vector<8x8xf32>
    %37 = math.exp %36 : vector<8x8xf32>
    %cst_15 = arith.constant dense<0.000000e+00> : vector<8xf32>
    %38 = vector.multi_reduction <add>, %37, %cst_15 [1] : vector<8x8xf32> to vector<8xf32>
    %39 = vector.shape_cast %38 : vector<8xf32> to vector<8x1xf32>
    %40 = vector.broadcast %39 : vector<8x1xf32> to vector<8x8xf32>
    %41 = arith.divf %37, %40 : vector<8x8xf32>
    %cst_16 = arith.constant dense<0.000000e+00> : vector<8x8xf32>
    %42 = tpu.matmul %41, %31, %cst_16 {dimension_numbers = #tpu.dot_dimension_numbers<[1], [0], [0], [1], [0, 0, 1, 1], [], []>} : vector<8x8xf32>, vector<8x8xf32>, vector<8x8xf32> -> vector<8x8xf32>
    %c0_17 = arith.constant 0 : index
    %c8 = arith.constant 8 : index
    %43 = vector.load %arg9[%c0_17, %c8] : memref<8x32xf32, #tpu.memory_space<vmem>>, vector<8x8xf32>
    tpu.vector_store %arg9[%c0_17, %c8], %42 {strides = array<i32>} : memref<8x32xf32, #tpu.memory_space<vmem>>, vector<8x8xf32>,
    %44 = vector.extract_strided_slice %13 {offsets = [0, 16], sizes = [8, 8], strides = [1, 1]} : vector<8x96xf32> to vector<8x8xf32>
    %45 = vector.extract_strided_slice %13 {offsets = [0, 48], sizes = [8, 8], strides = [1, 1]} : vector<8x96xf32> to vector<8x8xf32>
    %46 = vector.extract_strided_slice %13 {offsets = [0, 80], sizes = [8, 8], strides = [1, 1]} : vector<8x96xf32> to vector<8x8xf32>
    %cst_18 = arith.constant dense<0.000000e+00> : vector<8x8xf32>
    %47 = tpu.matmul %44, %45, %cst_18 {dimension_numbers = #tpu.dot_dimension_numbers<[1], [1], [0], [0], [0, 0, 1, 0], [], []>} : vector<8x8xf32>, vector<8x8xf32>, vector<8x8xf32> -> vector<8x8xf32>
    %cst_19 = arith.constant dense<0xFF800000> : vector<8xf32>
    %48 = vector.multi_reduction <maximumf>, %47, %cst_19 [1] : vector<8x8xf32> to vector<8xf32>
    %49 = vector.shape_cast %48 : vector<8xf32> to vector<8x1xf32>
    %50 = vector.broadcast %49 : vector<8x1xf32> to vector<8x8xf32>
    %51 = arith.subf %47, %50 : vector<8x8xf32>
    %52 = math.exp %51 : vector<8x8xf32>
    %cst_20 = arith.constant dense<0.000000e+00> : vector<8xf32>
    %53 = vector.multi_reduction <add>, %52, %cst_20 [1] : vector<8x8xf32> to vector<8xf32>
    %54 = vector.shape_cast %53 : vector<8xf32> to vector<8x1xf32>
    %55 = vector.broadcast %54 : vector<8x1xf32> to vector<8x8xf32>
    %56 = arith.divf %52, %55 : vector<8x8xf32>
    %cst_21 = arith.constant dense<0.000000e+00> : vector<8x8xf32>
    %57 = tpu.matmul %56, %46, %cst_21 {dimension_numbers = #tpu.dot_dimension_numbers<[1], [0], [0], [1], [0, 0, 1, 1], [], []>} : vector<8x8xf32>, vector<8x8xf32>, vector<8x8xf32> -> vector<8x8xf32>
    %c0_22 = arith.constant 0 : index
    %c16 = arith.constant 16 : index
    %58 = vector.load %arg9[%c0_22, %c16] : memref<8x32xf32, #tpu.memory_space<vmem>>, vector<8x8xf32>
    tpu.vector_store %arg9[%c0_22, %c16], %57 {strides = array<i32>} : memref<8x32xf32, #tpu.memory_space<vmem>>, vector<8x8xf32>,
    %59 = vector.extract_strided_slice %13 {offsets = [0, 24], sizes = [8, 8], strides = [1, 1]} : vector<8x96xf32> to vector<8x8xf32>
    %60 = vector.extract_strided_slice %13 {offsets = [0, 56], sizes = [8, 8], strides = [1, 1]} : vector<8x96xf32> to vector<8x8xf32>
    %61 = vector.extract_strided_slice %13 {offsets = [0, 88], sizes = [8, 8], strides = [1, 1]} : vector<8x96xf32> to vector<8x8xf32>
    %cst_23 = arith.constant dense<0.000000e+00> : vector<8x8xf32>
    %62 = tpu.matmul %59, %60, %cst_23 {dimension_numbers = #tpu.dot_dimension_numbers<[1], [1], [0], [0], [0, 0, 1, 0], [], []>} : vector<8x8xf32>, vector<8x8xf32>, vector<8x8xf32> -> vector<8x8xf32>
    %cst_24 = arith.constant dense<0xFF800000> : vector<8xf32>
    %63 = vector.multi_reduction <maximumf>, %62, %cst_24 [1] : vector<8x8xf32> to vector<8xf32>
    %64 = vector.shape_cast %63 : vector<8xf32> to vector<8x1xf32>
    %65 = vector.broadcast %64 : vector<8x1xf32> to vector<8x8xf32>
    %66 = arith.subf %62, %65 : vector<8x8xf32>
    %67 = math.exp %66 : vector<8x8xf32>
    %cst_25 = arith.constant dense<0.000000e+00> : vector<8xf32>
    %68 = vector.multi_reduction <add>, %67, %cst_25 [1] : vector<8x8xf32> to vector<8xf32>
    %69 = vector.shape_cast %68 : vector<8xf32> to vector<8x1xf32>
    %70 = vector.broadcast %69 : vector<8x1xf32> to vector<8x8xf32>
    %71 = arith.divf %67, %70 : vector<8x8xf32>
    %cst_26 = arith.constant dense<0.000000e+00> : vector<8x8xf32>
    %72 = tpu.matmul %71, %61, %cst_26 {dimension_numbers = #tpu.dot_dimension_numbers<[1], [0], [0], [1], [0, 0, 1, 1], [], []>} : vector<8x8xf32>, vector<8x8xf32>, vector<8x8xf32> -> vector<8x8xf32>
    %c0_27 = arith.constant 0 : index
    %c24 = arith.constant 24 : index
    %73 = vector.load %arg9[%c0_27, %c24] : memref<8x32xf32, #tpu.memory_space<vmem>>, vector<8x8xf32>
    tpu.vector_store %arg9[%c0_27, %c24], %72 {strides = array<i32>} : memref<8x32xf32, #tpu.memory_space<vmem>>, vector<8x8xf32>,
    %c0_28 = arith.constant 0 : index
    %c0_29 = arith.constant 0 : index
    %74 = vector.load %arg8[%c0_28, %c0_29] : memref<8x32xf32, #tpu.memory_space<vmem>>, vector<8x32xf32>
    %c0_30 = arith.constant 0 : index
    %c0_31 = arith.constant 0 : index
    %75 = vector.load %arg9[%c0_30, %c0_31] : memref<8x32xf32, #tpu.memory_space<vmem>>, vector<8x32xf32>
    %76 = arith.index_cast %arg1 : i32 to index
    %c0_32 = arith.constant 0 : index
    %c0_33 = arith.constant 0 : index
    %77 = vector.load %arg5[%76, %c0_32, %c0_33] : memref<1x32x32xf32, #tpu.memory_space<vmem>>, vector<1x32x32xf32>
    %78 = vector.shape_cast %77 : vector<1x32x32xf32> to vector<32x32xf32>
    %cst_34 = arith.constant dense<0.000000e+00> : vector<8x32xf32>
    %79 = tpu.matmul %75, %78, %cst_34 {dimension_numbers = #tpu.dot_dimension_numbers<[1], [0], [0], [1], [0, 0, 1, 1], [], []>} : vector<8x32xf32>, vector<32x32xf32>, vector<8x32xf32> -> vector<8x32xf32>
    %80 = arith.addf %74, %79 : vector<8x32xf32>
    %c0_35 = arith.constant 0 : index
    %c0_36 = arith.constant 0 : index
    %81 = vector.load %arg8[%c0_35, %c0_36] : memref<8x32xf32, #tpu.memory_space<vmem>>, vector<8x32xf32>
    tpu.vector_store %arg8[%c0_35, %c0_36], %80 {strides = array<i32>} : memref<8x32xf32, #tpu.memory_space<vmem>>, vector<8x32xf32>,
    %c0_i32_37 = arith.constant 0 : i32
    %82 = arith.cmpi eq, %arg1, %c0_i32_37 : i32
    %83 = arith.extui %82 : i1 to i32
    %c0_i32_38 = arith.constant 0 : i32
    %84 = arith.cmpi ne, %83, %c0_i32_38 : i32
    scf.if %84 {
      %c0_39 = arith.constant 0 : index
      %c0_40 = arith.constant 0 : index
      %85 = vector.load %arg8[%c0_39, %c0_40] : memref<8x32xf32, #tpu.memory_space<vmem>>, vector<8x32xf32>
      %c0_41 = arith.constant 0 : index
      %c0_42 = arith.constant 0 : index
      %86 = vector.load %arg6[%c0_41, %c0_42] : memref<1x32xf32, #tpu.memory_space<vmem>>, vector<1x32xf32>
      %87 = vector.broadcast %86 : vector<1x32xf32> to vector<8x32xf32>
      %88 = arith.addf %85, %87 : vector<8x32xf32>
      %c0_43 = arith.constant 0 : index
      %c0_44 = arith.constant 0 : index
      %c0_45 = arith.constant 0 : index
      %89 = vector.load %arg7[%c0_43, %c0_44, %c0_45] : memref<1x8x32xf32, #tpu.memory_space<vmem>>, vector<1x8x32xf32>
      %90 = vector.shape_cast %89 : vector<1x8x32xf32> to vector<8x32xf32>
      %91 = vector.shape_cast %88 : vector<8x32xf32> to vector<1x8x32xf32>
      tpu.vector_store %arg7[%c0_43, %c0_44, %c0_45], %91 {strides = array<i32>} : memref<1x8x32xf32, #tpu.memory_space<vmem>>, vector<1x8x32xf32>,
    } else {
    }
    return
  }
  func.func @transform_0(%arg0: i32, %arg1: i32) -> (i32, i32, i32) {
    %c0_i32 = arith.constant 0 : i32
    %c0_i32_0 = arith.constant 0 : i32
    %c0_i32_1 = arith.constant 0 : i32
    return %arg0, %c0_i32, %c0_i32_0 : i32, i32, i32
  }
  func.func @transform_1(%arg0: i32, %arg1: i32) -> (i32, i32, i32) {
    %c0_i32 = arith.constant 0 : i32
    %c0_i32_0 = arith.constant 0 : i32
    %c0_i32_1 = arith.constant 0 : i32
    %c0_i32_2 = arith.constant 0 : i32
    return %c0_i32, %c0_i32_0, %c0_i32_1 : i32, i32, i32
  }
  func.func @transform_2(%arg0: i32, %arg1: i32) -> (i32, i32, i32) {
    %c0_i32 = arith.constant 0 : i32
    %c0_i32_0 = arith.constant 0 : i32
    %c0_i32_1 = arith.constant 0 : i32
    %c0_i32_2 = arith.constant 0 : i32
    return %c0_i32, %c0_i32_0, %c0_i32_1 : i32, i32, i32
  }
  func.func @transform_3(%arg0: i32, %arg1: i32) -> (i32, i32, i32) {
    %c0_i32 = arith.constant 0 : i32
    %c0_i32_0 = arith.constant 0 : i32
    %c0_i32_1 = arith.constant 0 : i32
    %c0_i32_2 = arith.constant 0 : i32
    return %c0_i32, %c0_i32_0, %c0_i32_1 : i32, i32, i32
  }
  func.func @transform_4(%arg0: i32, %arg1: i32) -> (i32, i32) {
    %c0_i32 = arith.constant 0 : i32
    %c0_i32_0 = arith.constant 0 : i32
    %c0_i32_1 = arith.constant 0 : i32
    return %c0_i32, %c0_i32_0 : i32, i32
  }
  func.func @transform_5(%arg0: i32, %arg1: i32) -> (i32, i32, i32) {
    %c0_i32 = arith.constant 0 : i32
    %c0_i32_0 = arith.constant 0 : i32
    %c0_i32_1 = arith.constant 0 : i32
    return %arg0, %c0_i32, %c0_i32_0 : i32, i32, i32
  }
}

</mosaic_0001>

<llo_original>
// kernel: tpu_custom_call.1
$region0: #{tpu_custom_call.1}
  #allocation0 [shape = 'u32[]', space=smem, size = 0x4, offset = 0x4, fixed_abs, tag = 'smem constant byte address 0x4 - core index']
  #allocation1 [shape = 'u32[144,128]{1,0:T(1,128)}', space=vmem, size = 0x12000, scoped, tag = 'internal scratch']
  #allocation2 [shape = 'f32[8,32]{1,0:T(8,128)}', space=vmem, size = 0x1000, scoped, tag = 'scratch operand']
  #allocation3 [shape = 'f32[8,32]{1,0:T(8,128)}', space=vmem, size = 0x1000, scoped, tag = 'scratch operand']
  %s0 = inlined_call_operand.hbm [shape: f32[2,8,32], index: 0, kind: input, shape index: {}]
  %s1 = inlined_call_operand.hbm [shape: f32[1,32,96], index: 1, kind: input, shape index: {}]
  %s2 = inlined_call_operand.vmem [shape: f32[1,1,96], index: 2, kind: input, shape index: {}]
  %s3 = inlined_call_operand.hbm [shape: f32[1,32,32], index: 3, kind: input, shape index: {}]
  %s4 = inlined_call_operand.vmem [shape: f32[1,32], index: 4, kind: input, shape index: {}]
  %s5 = inlined_call_operand.hbm [shape: f32[2,8,32], index: 5, kind: output, shape index: {}]
  %s6 = sld [smem:[#allocation0]]
  $region73: #{tpu_custom_call.1} parent=0
    _
  %s8 = ssub.s32 1, %s6
  %s9 = scalar_select 0, %s8, %s6
  $region1: #{tpu_custom_call.1} parent=0
    #allocation4 [shape = 'u8[8192]{0}', space=vmem, size = 0x2000, scoped, tag = 'input window, operand 0']
    #allocation5 [shape = 's32[2]{0}', space=sflag, size = 0x8, scoped, tag = 'scoped memory for tpu_custom_call.1']
    #allocation6 [shape = 's32[2]{0}', space=sflag, size = 0x8, scoped, tag = 'scoped memory for tpu_custom_call.1']
    #allocation7 [shape = 'u8[16384]{0}', space=vmem, size = 0x4000, scoped, tag = 'input window, operand 1, single buffered']
    #allocation8 [shape = 's32[1]{0}', space=sflag, size = 0x4, scoped, tag = 'scoped memory for tpu_custom_call.1']
    #allocation9 [shape = 'u8[16384]{0}', space=vmem, size = 0x4000, scoped, tag = 'input window, operand 3, single buffered']
    #allocation10 [shape = 'u8[8192]{0}', space=vmem, size = 0x2000, scoped, tag = 'output window, operand 0']
    %10 = vsyncpa [#allocation5], 0
    %s11 = scalar_lea.sflag [#allocation5], 1
    %12 = vsyncpa %s11, 0
    %13 = vsyncpa [#allocation8], 0
    %14 = vsyncpa [#allocation6], 0
    %s15 = scalar_lea.sflag [#allocation6], 1
    %16 = vsyncpa %s15, 0
    loop: start=0, step=1, limit=4
    $region2: #{tpu_custom_call.1} parent=1 // loop_pre_header
      _
    $region3: #{tpu_custom_call.1} parent=1 // loop_header
      %s18 = sphi 0, %s22
      %p19 = scmp.ge.s32.totalorder %s18, 4
      %s25 = sphi 0, %s37
      %s26 = sphi 0, %s33
      %s27 = sphi 0, %s25
      %s28 = sphi 0, %s26
      %s29 = sphi 0, %s27
      %s30 = sphi 0, %s28
      %s40 = sphi 0, %s42
      %s43 = sphi 0, %s40
      %s44 = sphi 0, %s43
      %s60 = sphi 0, %s44
      %s64 = sphi 0, %s64
      %s66 = sphi 0, %s64
      %s67 = sphi 0, %s66
      %s81 = sphi 0, %s67
      %s85 = sphi 0, %s85
      %s87 = sphi 0, %s85
      %s88 = sphi 0, %s87
      %s102 = sphi 0, %s88
      %s106 = sphi 0, %s106
      %s108 = sphi 0, %s106
      %s109 = sphi 0, %s108
      %s123 = sphi 0, %s109
      %s127 = sphi 0, %s127
      %s129 = sphi 0, %s127
      %s130 = sphi 0, %s129
      %s144 = sphi 0, %s130
      %s150 = sphi 0, %s152
      %s153 = sphi 0, %s150
      %s154 = sphi 0, %s153
      %s170 = sphi 0, %s154
    $region4: #{tpu_custom_call.1} parent=1 // loop_header_branch
      %21 = sbr.rel (%p19) target = $region8
    $region5: #{tpu_custom_call.1} parent=1 // loop_body
      %s23 = ssub.s32 %s18, 1
      %s24 = ssub.s32 %s18, 2
      %s31 = sadd.s32 1, %s26
      %p32 = scmp.ge.s32.totalorder %s31, 1
      %s33 = scalar_select %p32, 0, %s31
      %s34 = sadd.s32 1, %s25
      %s35 = scalar_select %p32, %s34, %s25
      %p36 = scmp.ge.s32.totalorder %s35, 2
      %s37 = scalar_select %p36, 0, %s35
      %s38 = ssub.s32 %s25, %s37
      %p39 = scmp.eq.s32.totalorder %s38, 0
      %s41 = sadd.s32 %s40, 1
      %s42 = scalar_select %p39, %s40, %s41
      %p45 = pneg %p39
      %p46 = scmp.eq.s32.totalorder %s18, 1
      %p47 = por %p45, %p46
      %p48 = scmp.ne.s32.totalorder %s40, %s43
      %p49 = scmp.eq.s32.totalorder %s18, 0
      %p50 = por %p48, %p49
      %p51 = scmp.ne.s32.totalorder %s40, %s43
      %p52 = scmp.eq.s32.totalorder %s23, 1
      %p53 = por %p51, %p52
      %p54 = scmp.ne.s32.totalorder %s43, %s44
      %p55 = scmp.eq.s32.totalorder %s23, 0
      %p56 = por %p54, %p55
      %p57 = scmp.ne.s32.totalorder %s43, %s44
      %p58 = scmp.eq.s32.totalorder %s24, 1
      %p59 = por %p57, %p58
      %p61 = scmp.ne.s32.totalorder %s44, %s60
      %p62 = scmp.eq.s32.totalorder %s24, 0
      %p63 = por %p61, %p62
      %s65 = sadd.s32 %s64, 1
      %p68 = scmp.eq.s32.totalorder %s18, 1
      %p69 = scmp.ne.s32.totalorder %s64, %s66
      %p70 = scmp.eq.s32.totalorder %s18, 0
      %p71 = por %p69, %p70
      %p72 = scmp.ne.s32.totalorder %s64, %s66
      %p73 = scmp.eq.s32.totalorder %s23, 1
      %p74 = por %p72, %p73
      %p75 = scmp.ne.s32.totalorder %s66, %s67
      %p76 = scmp.eq.s32.totalorder %s23, 0
      %p77 = por %p75, %p76
      %p78 = scmp.ne.s32.totalorder %s66, %s67
      %p79 = scmp.eq.s32.totalorder %s24, 1
      %p80 = por %p78, %p79
      %p82 = scmp.ne.s32.totalorder %s67, %s81
      %p83 = scmp.eq.s32.totalorder %s24, 0
      %p84 = por %p82, %p83
      %s86 = sadd.s32 %s85, 1
      %p89 = scmp.eq.s32.totalorder %s18, 1
      %p90 = scmp.ne.s32.totalorder %s85, %s87
      %p91 = scmp.eq.s32.totalorder %s18, 0
      %p92 = por %p90, %p91
      %p93 = scmp.ne.s32.totalorder %s85, %s87
      %p94 = scmp.eq.s32.totalorder %s23, 1
      %p95 = por %p93, %p94
      %p96 = scmp.ne.s32.totalorder %s87, %s88
      %p97 = scmp.eq.s32.totalorder %s23, 0
      %p98 = por %p96, %p97
      %p99 = scmp.ne.s32.totalorder %s87, %s88
      %p100 = scmp.eq.s32.totalorder %s24, 1
      %p101 = por %p99, %p100
      %p103 = scmp.ne.s32.totalorder %s88, %s102
      %p104 = scmp.eq.s32.totalorder %s24, 0
      %p105 = por %p103, %p104
      %s107 = sadd.s32 %s106, 1
      %p110 = scmp.eq.s32.totalorder %s18, 1
      %p111 = scmp.ne.s32.totalorder %s106, %s108
      %p112 = scmp.eq.s32.totalorder %s18, 0
      %p113 = por %p111, %p112
      %p114 = scmp.ne.s32.totalorder %s106, %s108
      %p115 = scmp.eq.s32.totalorder %s23, 1
      %p116 = por %p114, %p115
      %p117 = scmp.ne.s32.totalorder %s108, %s109
      %p118 = scmp.eq.s32.totalorder %s23, 0
      %p119 = por %p117, %p118
      %p120 = scmp.ne.s32.totalorder %s108, %s109
      %p121 = scmp.eq.s32.totalorder %s24, 1
      %p122 = por %p120, %p121
      %p124 = scmp.ne.s32.totalorder %s109, %s123
      %p125 = scmp.eq.s32.totalorder %s24, 0
      %p126 = por %p124, %p125
      %s128 = sadd.s32 %s127, 1
      %p131 = scmp.eq.s32.totalorder %s18, 1
      %p132 = scmp.ne.s32.totalorder %s127, %s129
      %p133 = scmp.eq.s32.totalorder %s18, 0
      %p134 = por %p132, %p133
      %p135 = scmp.ne.s32.totalorder %s127, %s129
      %p136 = scmp.eq.s32.totalorder %s23, 1
      %p137 = por %p135, %p136
      %p138 = scmp.ne.s32.totalorder %s129, %s130
      %p139 = scmp.eq.s32.totalorder %s23, 0
      %p140 = por %p138, %p139
      %p141 = scmp.ne.s32.totalorder %s129, %s130
      %p142 = scmp.eq.s32.totalorder %s24, 1
      %p143 = por %p141, %p142
      %p145 = scmp.ne.s32.totalorder %s130, %s144
      %p146 = scmp.eq.s32.totalorder %s24, 0
      %p147 = por %p145, %p146
      %s148 = ssub.s32 %s25, %s37
      %p149 = scmp.eq.s32.totalorder %s148, 0
      %s151 = sadd.s32 %s150, 1
      %s152 = scalar_select %p149, %s150, %s151
      %p155 = pneg %p149
      %p156 = scmp.eq.s32.totalorder %s18, 1
      %p157 = por %p155, %p156
      %p158 = scmp.ne.s32.totalorder %s150, %s153
      %p159 = scmp.eq.s32.totalorder %s18, 0
      %p160 = por %p158, %p159
      %p161 = scmp.ne.s32.totalorder %s150, %s153
      %p162 = scmp.eq.s32.totalorder %s23, 1
      %p163 = por %p161, %p162
      %p164 = scmp.ne.s32.totalorder %s153, %s154
      %p165 = scmp.eq.s32.totalorder %s23, 0
      %p166 = por %p164, %p165
      %p167 = scmp.ne.s32.totalorder %s153, %s154
      %p168 = scmp.eq.s32.totalorder %s24, 1
      %p169 = por %p167, %p168
      %p171 = scmp.ne.s32.totalorder %s154, %s170
      %p172 = scmp.eq.s32.totalorder %s24, 0
      %p173 = por %p171, %p172
      %p174 = scmp.le.s32.totalorder 1, %s18
      %p175 = scmp.lt.s32.totalorder %s18, 3
      %p176 = pnand %p174, %p175
      %p177 = pneg %p176
      // Predicated region
      $region9: #{tpu_custom_call.1} parent=5 // pred_check
        _
      $region10: #{tpu_custom_call.1} parent=5 // pred_check_branch
        %179 = sbr.rel (%p176) target = $region12
      $region11: #{tpu_custom_call.1} parent=5 // pred_region
        %s180 = ssub.s32 %s18, 1
        // Predicated region
        $region13: #{tpu_custom_call.1} parent=11 // pred_check
          %p181 = pneg %p77
        $region14: #{tpu_custom_call.1} parent=11 // pred_check_branch
          %183 = sbr.rel (%p181) target = $region16
        $region15: #{tpu_custom_call.1} parent=11 // pred_region
          %s185 = ssub.s32 512, 512
          %186 = vsyncadd [#allocation8], %s185
          %s187 = sshll.u32 [#allocation7], 4
          %s188 = int_to_ptr.vmem [resolvable:$true] %s187
          %193 = dma.hbm_to_vmem [thread:$0]  %s1, 512, %s188, [#allocation8], 128, 128, 8
        $region16: #{tpu_custom_call.1} parent=11 // pred_fallthru
          _
        // Predicated region
        $region17: #{tpu_custom_call.1} parent=11 // pred_check
          %p194 = pneg %p98
        $region18: #{tpu_custom_call.1} parent=11 // pred_check_branch
          %196 = sbr.rel (%p194) target = $region20
        $region19: #{tpu_custom_call.1} parent=11 // pred_region
          _
        $region20: #{tpu_custom_call.1} parent=11 // pred_fallthru
          _
        // Predicated region
        $region21: #{tpu_custom_call.1} parent=11 // pred_check
          %p197 = pneg %p119
        $region22: #{tpu_custom_call.1} parent=11 // pred_check_branch
          %199 = sbr.rel (%p197) target = $region24
        $region23: #{tpu_custom_call.1} parent=11 // pred_region
          %s201 = ssub.s32 512, 512
          %202 = vsyncadd [#allocation8], %s201
          %s203 = sshll.u32 [#allocation9], 4
          %s204 = int_to_ptr.vmem [resolvable:$true] %s203
          %209 = dma.hbm_to_vmem [thread:$0]  %s3, 512, %s204, [#allocation8], 128, 128, 8
        $region24: #{tpu_custom_call.1} parent=11 // pred_fallthru
          _
        // Predicated region
        $region25: #{tpu_custom_call.1} parent=11 // pred_check
          %p210 = pneg %p140
        $region26: #{tpu_custom_call.1} parent=11 // pred_check_branch
          %212 = sbr.rel (%p210) target = $region28
        $region27: #{tpu_custom_call.1} parent=11 // pred_region
          _
        $region28: #{tpu_custom_call.1} parent=11 // pred_fallthru
          _
      $region12: #{tpu_custom_call.1} parent=5 // pred_fallthru
        _
      %p213 = scmp.lt.s32.totalorder %s18, 2
      // Predicated region
      $region29: #{tpu_custom_call.1} parent=5 // pred_check
        %p214 = pneg %p213
      $region30: #{tpu_custom_call.1} parent=5 // pred_check_branch
        %216 = sbr.rel (%p214) target = $region32
      $region31: #{tpu_custom_call.1} parent=5 // pred_region
        // Predicated region
        $region33: #{tpu_custom_call.1} parent=31 // pred_check
          %p217 = pneg %p50
        $region34: #{tpu_custom_call.1} parent=31 // pred_check_branch
          %219 = sbr.rel (%p217) target = $region36
        $region35: #{tpu_custom_call.1} parent=31 // pred_region
          %s220 = sand.u32 %s40, 1
          %s221 = scalar_lea.sflag [#allocation5], %s220
          %s222 = sand.u32 %s40, 1
          %s223 = smul.addr %s222, 8
          %s224 = scalar_lea.vmem [#allocation4], %s223
          %s226 = ssub.s32 128, 128
          %227 = vsyncadd %s221, %s226
          %s228 = smul.addr %s25, 128
          %s229 = scalar_lea.hbm %s0, %s228
          %s231 = sshll.u32 %s224, 4
          %s232 = int_to_ptr.vmem [resolvable:$true] %s231
          %234 = dma.hbm_to_vmem [thread:$0]  %s229, 128, %s232, %s221
        $region36: #{tpu_custom_call.1} parent=31 // pred_fallthru
          _
      $region32: #{tpu_custom_call.1} parent=5 // pred_fallthru
        _
      %p235 = scmp.le.s32.totalorder 1, %s18
      %p236 = scmp.lt.s32.totalorder %s18, 3
      %p237 = pnand %p235, %p236
      %p238 = pneg %p237
      // Predicated region
      $region37: #{tpu_custom_call.1} parent=5 // pred_check
        _
      $region38: #{tpu_custom_call.1} parent=5 // pred_check_branch
        %240 = sbr.rel (%p237) target = $region40
      $region39: #{tpu_custom_call.1} parent=5 // pred_region
        %s241 = ssub.s32 %s18, 1
        %s242 = sand.u32 %s43, 1
        %s243 = scalar_lea.sflag [#allocation5], %s242
        %s244 = sand.u32 %s43, 1
        %s245 = smul.addr %s244, 8
        %s246 = scalar_lea.vmem [#allocation4], %s245
        // Predicated region
        $region41: #{tpu_custom_call.1} parent=39 // pred_check
          %p247 = pneg %p56
        $region42: #{tpu_custom_call.1} parent=39 // pred_check_branch
          %249 = sbr.rel (%p247) target = $region44
        $region43: #{tpu_custom_call.1} parent=39 // pred_region
          %250 = dma.done %s243, 128
        $region44: #{tpu_custom_call.1} parent=39 // pred_fallthru
          _
        // Predicated region
        $region45: #{tpu_custom_call.1} parent=39 // pred_check
          %p251 = pneg %p77
        $region46: #{tpu_custom_call.1} parent=39 // pred_check_branch
          %253 = sbr.rel (%p251) target = $region48
        $region47: #{tpu_custom_call.1} parent=39 // pred_region
          %254 = dma.done [#allocation8], 512
        $region48: #{tpu_custom_call.1} parent=39 // pred_fallthru
          _
        // Predicated region
        $region49: #{tpu_custom_call.1} parent=39 // pred_check
          %p255 = pneg %p119
        $region50: #{tpu_custom_call.1} parent=39 // pred_check_branch
          %257 = sbr.rel (%p255) target = $region52
        $region51: #{tpu_custom_call.1} parent=39 // pred_region
          %258 = dma.done [#allocation8], 512
        $region52: #{tpu_custom_call.1} parent=39 // pred_fallthru
          _
        %s259 = sand.u32 %s43, 1
        %s260 = scalar_lea.sflag [#allocation5], %s259
        %s261 = sand.u32 %s43, 1
        %s262 = smul.addr %s261, 8
        %s263 = scalar_lea.vmem [#allocation4], %s262
        %p264 = pneg %p56
        %p265 = pneg %p53
        %p266 = pneg %p77
        %p267 = pneg %p74
        %p268 = pneg %p98
        %p269 = pneg %p95
        %p270 = pneg %p119
        %p271 = pneg %p116
        %p272 = pneg %p140
        %p273 = pneg %p137
        %p274 = pneg %p166
        %p275 = pneg %p163
        %s276 = sand.u32 %s153, 1
        %s277 = scalar_lea.sflag [#allocation6], %s276
        %s278 = sand.u32 %s153, 1
        %s279 = smul.addr %s278, 8
        %s280 = scalar_lea.vmem [#allocation10], %s279
        %p281 = scmp.eq.s32.totalorder %s28, 0
        // Predicated region
        $region53: #{tpu_custom_call.1} parent=39 // pred_check
          %p282 = pneg %p281
        $region54: #{tpu_custom_call.1} parent=39 // pred_check_branch
          %284 = sbr.rel (%p282) target = $region56
        $region55: #{tpu_custom_call.1} parent=39 // pred_region
          %vm285 = vcmask 261120
          %286 = vst.msk [vmem:[#allocation2] sm:$0xff] %vm285, 0.0
        $region56: #{tpu_custom_call.1} parent=39 // pred_fallthru
          _
        %v287 = vld [vmem:[%s246] sm:$0xff]
        %s288 = smul.u32 %s28, 32
        %s289 = scalar_lea.vmem [#allocation7], %s288
        %v290 = vld [vmem:[%s289] sm:$0xff]
        %v291 = vld [vmem:[%s289 + $0x8] sm:$0xff]
        %v292 = vld [vmem:[%s289 + $0x10] sm:$0xff]
        %v293 = vld [vmem:[%s289 + $0x18] sm:$0xff]
        %s294 = scalar_lea.vmem %s2, %s28
        %v295 = vld [vmem:[%s294] sm:$0x1]
        %v297 = vlaneseq
        %v298 = vshrl.u32 %v297, 7
        %v299 = vsub.s32 0, %v298
        %v300 = vrot.slane %v295, %v299
        %vm302 = vcmask 261120
        %v304 = vsel %vm302, %v287, 0
        %306 = vmatprep.subr.mxu0 0.0
        %307 = vmatpush1.msra.mxu0 0.0
        %308 = vmatprep.subr.mxu0 0.0
        %309 = vmatpush1.msra.mxu0 0.0
        %310 = vmatprep.subr.mxu0 0.0
        %311 = vmatpush1.msra.mxu0 0.0
        %312 = vmatprep.subr.mxu0 0.0
        %313 = vmatpush1.msra.mxu0 0.0
        %314 = vmatprep.subr.mxu0 0.0
        %315 = vmatpush1.msra.mxu0 0.0
        %316 = vmatprep.subr.mxu0 0.0
        %317 = vmatpush1.msra.mxu0 0.0
        %318 = vmatprep.subr.mxu0 0.0
        %319 = vmatpush1.msra.mxu0 0.0
        %320 = vmatprep.subr.mxu0 0.0
        %321 = vmatpush1.msra.mxu0 0.0
        %322 = vmatprep.subr.mxu0 0.0
        %323 = vmatpush1.msra.mxu0 0.0
        %324 = vmatprep.subr.mxu0 0.0
        %325 = vmatpush1.msra.mxu0 0.0
        %326 = vmatprep.subr.mxu0 0.0
        %327 = vmatpush1.msra.mxu0 0.0
        %328 = vmatprep.subr.mxu0 0.0
        %329 = vmatpush1.msra.mxu0 0.0
        %330 = vmatprep.subr.mxu0 0.0
        %331 = vmatpush1.msra.mxu0 %v293
        %332 = vmatprep.subr.mxu0 0.0
        %333 = vmatpush1.msra.mxu0 %v292
        %334 = vmatprep.subr.mxu0 0.0
        %335 = vmatpush1.msra.mxu0 %v291
        %336 = vmatprep.subr.mxu0 0.0
        %337 = vmatpush1.msra.mxu0 %v290
        %338 = vmatprep.subr.mxu0 0.0
        %339 = vmatpush2.msra.mxu0 0.0
        %340 = vmatprep.subr.mxu0 0.0
        %341 = vmatpush2.msra.mxu0 0.0
        %342 = vmatprep.subr.mxu0 0.0
        %343 = vmatpush2.msra.mxu0 0.0
        %344 = vmatprep.subr.mxu0 0.0
        %345 = vmatpush2.msra.mxu0 0.0
        %346 = vmatprep.subr.mxu0 0.0
        %347 = vmatpush2.msra.mxu0 0.0
        %348 = vmatprep.subr.mxu0 0.0
        %349 = vmatpush2.msra.mxu0 0.0
        %350 = vmatprep.subr.mxu0 0.0
        %351 = vmatpush2.msra.mxu0 0.0
        %352 = vmatprep.subr.mxu0 0.0
        %353 = vmatpush2.msra.mxu0 0.0
        %354 = vmatprep.subr.mxu0 0.0
        %355 = vmatpush2.msra.mxu0 0.0
        %356 = vmatprep.subr.mxu0 0.0
        %357 = vmatpush2.msra.mxu0 0.0
        %358 = vmatprep.subr.mxu0 0.0
        %359 = vmatpush2.msra.mxu0 0.0
        %360 = vmatprep.subr.mxu0 0.0
        %361 = vmatpush2.msra.mxu0 0.0
        %362 = vmatprep.subr.mxu0 0.0
        %363 = vmatpush2.msra.mxu0 0.0
        %364 = vmatprep.subr.mxu0 0.0
        %365 = vmatpush2.msra.mxu0 0.0
        %366 = vmatprep.subr.mxu0 0.0
        %367 = vmatpush2.msra.mxu0 0.0
        %368 = vmatprep.subr.mxu0 0.0
        %369 = vmatpush2.msra.mxu0 0.0
        %370 = vmatprep.mubr.f32.mxu0 0.0
        %371 = vmatmul.mubr.f32.gmra.mxu0 %v304
        %v372 = vpop.f32.mrf.mxu0
        %v373 = vadd.f32 %v300, %v372
        %v374 = vpop.f32.mrf.mxu0
        %375 = vdwg.mxu0
        %377 = vrot.lane.b32.xlu0 %v373, 96
        %v378 = vpop.permute.xlu0 %377
        %vm379 = vcmask 64512
        %v380 = vsel %vm379, %v373, 0
        %v382 = vsel %vm379, %v378, 0
        %384 = vmatprep.subr.mxu0 0.0
        %385 = vmatpush1.xpose.msra.mxu0 0.0
        %386 = vmatprep.subr.mxu0 0.0
        %387 = vmatpush1.xpose.msra.mxu0 0.0
        %388 = vmatprep.subr.mxu0 0.0
        %389 = vmatpush1.xpose.msra.mxu0 0.0
        %390 = vmatprep.subr.mxu0 0.0
        %391 = vmatpush1.xpose.msra.mxu0 0.0
        %392 = vmatprep.subr.mxu0 0.0
        %393 = vmatpush1.xpose.msra.mxu0 0.0
        %394 = vmatprep.subr.mxu0 0.0
        %395 = vmatpush1.xpose.msra.mxu0 0.0
        %396 = vmatprep.subr.mxu0 0.0
        %397 = vmatpush1.xpose.msra.mxu0 0.0
        %398 = vmatprep.subr.mxu0 0.0
        %399 = vmatpush1.xpose.msra.mxu0 0.0
        %400 = vmatprep.subr.mxu0 0.0
        %401 = vmatpush1.xpose.msra.mxu0 0.0
        %402 = vmatprep.subr.mxu0 0.0
        %403 = vmatpush1.xpose.msra.mxu0 0.0
        %404 = vmatprep.subr.mxu0 0.0
        %405 = vmatpush1.xpose.msra.mxu0 0.0
        %406 = vmatprep.subr.mxu0 0.0
        %407 = vmatpush1.xpose.msra.mxu0 0.0
        %408 = vmatprep.subr.mxu0 0.0
        %409 = vmatpush1.xpose.msra.mxu0 0.0
        %410 = vmatprep.subr.mxu0 0.0
        %411 = vmatpush1.xpose.msra.mxu0 0.0
        %412 = vmatprep.subr.mxu0 0.0
        %413 = vmatpush1.xpose.msra.mxu0 0.0
        %414 = vmatprep.subr.mxu0 0.0
        %415 = vmatpush1.xpose.msra.mxu0 %v382
        %416 = vmatprep.subr.mxu0 0.0
        %417 = vmatpush2.xpose.msra.mxu0 0.0
        %418 = vmatprep.subr.mxu0 0.0
        %419 = vmatpush2.xpose.msra.mxu0 0.0
        %420 = vmatprep.subr.mxu0 0.0
        %421 = vmatpush2.xpose.msra.mxu0 0.0
        %422 = vmatprep.subr.mxu0 0.0
        %423 = vmatpush2.xpose.msra.mxu0 0.0
        %424 = vmatprep.subr.mxu0 0.0
        %425 = vmatpush2.xpose.msra.mxu0 0.0
        %426 = vmatprep.subr.mxu0 0.0
        %427 = vmatpush2.xpose.msra.mxu0 0.0
        %428 = vmatprep.subr.mxu0 0.0
        %429 = vmatpush2.xpose.msra.mxu0 0.0
        %430 = vmatprep.subr.mxu0 0.0
        %431 = vmatpush2.xpose.msra.mxu0 0.0
        %432 = vmatprep.subr.mxu0 0.0
        %433 = vmatpush2.xpose.msra.mxu0 0.0
        %434 = vmatprep.subr.mxu0 0.0
        %435 = vmatpush2.xpose.msra.mxu0 0.0
        %436 = vmatprep.subr.mxu0 0.0
        %437 = vmatpush2.xpose.msra.mxu0 0.0
        %438 = vmatprep.subr.mxu0 0.0
        %439 = vmatpush2.xpose.msra.mxu0 0.0
        %440 = vmatprep.subr.mxu0 0.0
        %441 = vmatpush2.xpose.msra.mxu0 0.0
        %442 = vmatprep.subr.mxu0 0.0
        %443 = vmatpush2.xpose.msra.mxu0 0.0
        %444 = vmatprep.subr.mxu0 0.0
        %445 = vmatpush2.xpose.msra.mxu0 0.0
        %446 = vmatprep.subr.mxu0 0.0
        %447 = vmatpush2.xpose.msra.mxu0 0.0
        %448 = vmatprep.mubr.f32.mxu0 0.0
        %449 = vmatmul.mubr.f32.gmra.mxu0 %v380
        %v450 = vpop.f32.mrf.mxu0
        %v451 = vadd.f32 0.0, %v450
        %v452 = vpop.f32.mrf.mxu0
        %453 = vdwg.mxu0
        %v454 = vsel %vm379, %v451, -inf
        %455 = vmax.xlane.f32.xlu0 %v454
        %v456 = vpop.xlane.xlu0 %455
        %v457 = vsub.f32 %v451, %v456
        %v458 = vmul.f32 %v457, 1.442695
        %v459 = vpow.pop %v458
        %v460 = vsel %vm379, %v459, 0.0
        %461 = vadd.xlane.f32.xlu0 %v460
        %v462 = vpop.xlane.xlu0 %461
        %v463 = vrcp.pop %v462
        %v464 = vmul.f32 %v459, %v463
        %465 = vrot.lane.b32.xlu0 %v373, 64
        %v466 = vpop.permute.xlu0 %465
        %v469 = vsel %vm379, %v464, 0
        %471 = vmatprep.subr.mxu0 0.0
        %472 = vmatpush1.msra.mxu0 0.0
        %473 = vmatprep.subr.mxu0 0.0
        %474 = vmatpush1.msra.mxu0 0.0
        %475 = vmatprep.subr.mxu0 0.0
        %476 = vmatpush1.msra.mxu0 0.0
        %477 = vmatprep.subr.mxu0 0.0
        %478 = vmatpush1.msra.mxu0 0.0
        %479 = vmatprep.subr.mxu0 0.0
        %480 = vmatpush1.msra.mxu0 0.0
        %481 = vmatprep.subr.mxu0 0.0
        %482 = vmatpush1.msra.mxu0 0.0
        %483 = vmatprep.subr.mxu0 0.0
        %484 = vmatpush1.msra.mxu0 0.0
        %485 = vmatprep.subr.mxu0 0.0
        %486 = vmatpush1.msra.mxu0 0.0
        %487 = vmatprep.subr.mxu0 0.0
        %488 = vmatpush1.msra.mxu0 0.0
        %489 = vmatprep.subr.mxu0 0.0
        %490 = vmatpush1.msra.mxu0 0.0
        %491 = vmatprep.subr.mxu0 0.0
        %492 = vmatpush1.msra.mxu0 0.0
        %493 = vmatprep.subr.mxu0 0.0
        %494 = vmatpush1.msra.mxu0 0.0
        %495 = vmatprep.subr.mxu0 0.0
        %496 = vmatpush1.msra.mxu0 0.0
        %497 = vmatprep.subr.mxu0 0.0
        %498 = vmatpush1.msra.mxu0 0.0
        %499 = vmatprep.subr.mxu0 0.0
        %500 = vmatpush1.msra.mxu0 0.0
        %501 = vmatprep.subr.mxu0 0.0
        %502 = vmatpush1.msra.mxu0 %v466
        %503 = vmatprep.subr.mxu0 0.0
        %504 = vmatpush2.msra.mxu0 0.0
        %505 = vmatprep.subr.mxu0 0.0
        %506 = vmatpush2.msra.mxu0 0.0
        %507 = vmatprep.subr.mxu0 0.0
        %508 = vmatpush2.msra.mxu0 0.0
        %509 = vmatprep.subr.mxu0 0.0
        %510 = vmatpush2.msra.mxu0 0.0
        %511 = vmatprep.subr.mxu0 0.0
        %512 = vmatpush2.msra.mxu0 0.0
        %513 = vmatprep.subr.mxu0 0.0
        %514 = vmatpush2.msra.mxu0 0.0
        %515 = vmatprep.subr.mxu0 0.0
        %516 = vmatpush2.msra.mxu0 0.0
        %517 = vmatprep.subr.mxu0 0.0
        %518 = vmatpush2.msra.mxu0 0.0
        %519 = vmatprep.subr.mxu0 0.0
        %520 = vmatpush2.msra.mxu0 0.0
        %521 = vmatprep.subr.mxu0 0.0
        %522 = vmatpush2.msra.mxu0 0.0
        %523 = vmatprep.subr.mxu0 0.0
        %524 = vmatpush2.msra.mxu0 0.0
        %525 = vmatprep.subr.mxu0 0.0
        %526 = vmatpush2.msra.mxu0 0.0
        %527 = vmatprep.subr.mxu0 0.0
        %528 = vmatpush2.msra.mxu0 0.0
        %529 = vmatprep.subr.mxu0 0.0
        %530 = vmatpush2.msra.mxu0 0.0
        %531 = vmatprep.subr.mxu0 0.0
        %532 = vmatpush2.msra.mxu0 0.0
        %533 = vmatprep.subr.mxu0 0.0
        %534 = vmatpush2.msra.mxu0 0.0
        %535 = vmatprep.mubr.f32.mxu0 0.0
        %536 = vmatmul.mubr.f32.gmra.mxu0 %v469
        %v537 = vpop.f32.mrf.mxu0
        %v538 = vadd.f32 0.0, %v537
        %v539 = vpop.f32.mrf.mxu0
        %540 = vdwg.mxu0
        %541 = vst.msk [vmem:[#allocation3] sm:$0xff] %vm379, %v538
        %542 = vrot.lane.b32.xlu0 %v373, 120
        %v543 = vpop.permute.xlu0 %542
        %544 = vrot.lane.b32.xlu0 %v373, 88
        %v545 = vpop.permute.xlu0 %544
        %v546 = vsel %vm379, %v543, 0
        %v548 = vsel %vm379, %v545, 0
        %550 = vmatprep.subr.mxu0 0.0
        %551 = vmatpush1.xpose.msra.mxu0 0.0
        %552 = vmatprep.subr.mxu0 0.0
        %553 = vmatpush1.xpose.msra.mxu0 0.0
        %554 = vmatprep.subr.mxu0 0.0
        %555 = vmatpush1.xpose.msra.mxu0 0.0
        %556 = vmatprep.subr.mxu0 0.0
        %557 = vmatpush1.xpose.msra.mxu0 0.0
        %558 = vmatprep.subr.mxu0 0.0
        %559 = vmatpush1.xpose.msra.mxu0 0.0
        %560 = vmatprep.subr.mxu0 0.0
        %561 = vmatpush1.xpose.msra.mxu0 0.0
        %562 = vmatprep.subr.mxu0 0.0
        %563 = vmatpush1.xpose.msra.mxu0 0.0
        %564 = vmatprep.subr.mxu0 0.0
        %565 = vmatpush1.xpose.msra.mxu0 0.0
        %566 = vmatprep.subr.mxu0 0.0
        %567 = vmatpush1.xpose.msra.mxu0 0.0
        %568 = vmatprep.subr.mxu0 0.0
        %569 = vmatpush1.xpose.msra.mxu0 0.0
        %570 = vmatprep.subr.mxu0 0.0
        %571 = vmatpush1.xpose.msra.mxu0 0.0
        %572 = vmatprep.subr.mxu0 0.0
        %573 = vmatpush1.xpose.msra.mxu0 0.0
        %574 = vmatprep.subr.mxu0 0.0
        %575 = vmatpush1.xpose.msra.mxu0 0.0
        %576 = vmatprep.subr.mxu0 0.0
        %577 = vmatpush1.xpose.msra.mxu0 0.0
        %578 = vmatprep.subr.mxu0 0.0
        %579 = vmatpush1.xpose.msra.mxu0 0.0
        %580 = vmatprep.subr.mxu0 0.0
        %581 = vmatpush1.xpose.msra.mxu0 %v548
        %582 = vmatprep.subr.mxu0 0.0
        %583 = vmatpush2.xpose.msra.mxu0 0.0
        %584 = vmatprep.subr.mxu0 0.0
        %585 = vmatpush2.xpose.msra.mxu0 0.0
        %586 = vmatprep.subr.mxu0 0.0
        %587 = vmatpush2.xpose.msra.mxu0 0.0
        %588 = vmatprep.subr.mxu0 0.0
        %589 = vmatpush2.xpose.msra.mxu0 0.0
        %590 = vmatprep.subr.mxu0 0.0
        %591 = vmatpush2.xpose.msra.mxu0 0.0
        %592 = vmatprep.subr.mxu0 0.0
        %593 = vmatpush2.xpose.msra.mxu0 0.0
        %594 = vmatprep.subr.mxu0 0.0
        %595 = vmatpush2.xpose.msra.mxu0 0.0
        %596 = vmatprep.subr.mxu0 0.0
        %597 = vmatpush2.xpose.msra.mxu0 0.0
        %598 = vmatprep.subr.mxu0 0.0
        %599 = vmatpush2.xpose.msra.mxu0 0.0
        %600 = vmatprep.subr.mxu0 0.0
        %601 = vmatpush2.xpose.msra.mxu0 0.0
        %602 = vmatprep.subr.mxu0 0.0
        %603 = vmatpush2.xpose.msra.mxu0 0.0
        %604 = vmatprep.subr.mxu0 0.0
        %605 = vmatpush2.xpose.msra.mxu0 0.0
        %606 = vmatprep.subr.mxu0 0.0
        %607 = vmatpush2.xpose.msra.mxu0 0.0
        %608 = vmatprep.subr.mxu0 0.0
        %609 = vmatpush2.xpose.msra.mxu0 0.0
        %610 = vmatprep.subr.mxu0 0.0
        %611 = vmatpush2.xpose.msra.mxu0 0.0
        %612 = vmatprep.subr.mxu0 0.0
        %613 = vmatpush2.xpose.msra.mxu0 0.0
        %614 = vmatprep.mubr.f32.mxu0 0.0
        %615 = vmatmul.mubr.f32.gmra.mxu0 %v546
        %v616 = vpop.f32.mrf.mxu0
        %v617 = vadd.f32 0.0, %v616
        %v618 = vpop.f32.mrf.mxu0
        %619 = vdwg.mxu0
        %v620 = vsel %vm379, %v617, -inf
        %621 = vmax.xlane.f32.xlu0 %v620
        %v622 = vpop.xlane.xlu0 %621
        %v623 = vsub.f32 %v617, %v622
        %v624 = vmul.f32 %v623, 1.442695
        %v625 = vpow.pop %v624
        %v626 = vsel %vm379, %v625, 0.0
        %627 = vadd.xlane.f32.xlu0 %v626
        %v628 = vpop.xlane.xlu0 %627
        %v629 = vrcp.pop %v628
        %v630 = vmul.f32 %v625, %v629
        %631 = vrot.lane.b32.xlu0 %v373, 56
        %v632 = vpop.permute.xlu0 %631
        %v635 = vsel %vm379, %v630, 0
        %637 = vmatprep.subr.mxu0 0.0
        %638 = vmatpush1.msra.mxu0 0.0
        %639 = vmatprep.subr.mxu0 0.0
        %640 = vmatpush1.msra.mxu0 0.0
        %641 = vmatprep.subr.mxu0 0.0
        %642 = vmatpush1.msra.mxu0 0.0
        %643 = vmatprep.subr.mxu0 0.0
        %644 = vmatpush1.msra.mxu0 0.0
        %645 = vmatprep.subr.mxu0 0.0
        %646 = vmatpush1.msra.mxu0 0.0
        %647 = vmatprep.subr.mxu0 0.0
        %648 = vmatpush1.msra.mxu0 0.0
        %649 = vmatprep.subr.mxu0 0.0
        %650 = vmatpush1.msra.mxu0 0.0
        %651 = vmatprep.subr.mxu0 0.0
        %652 = vmatpush1.msra.mxu0 0.0
        %653 = vmatprep.subr.mxu0 0.0
        %654 = vmatpush1.msra.mxu0 0.0
        %655 = vmatprep.subr.mxu0 0.0
        %656 = vmatpush1.msra.mxu0 0.0
        %657 = vmatprep.subr.mxu0 0.0
        %658 = vmatpush1.msra.mxu0 0.0
        %659 = vmatprep.subr.mxu0 0.0
        %660 = vmatpush1.msra.mxu0 0.0
        %661 = vmatprep.subr.mxu0 0.0
        %662 = vmatpush1.msra.mxu0 0.0
        %663 = vmatprep.subr.mxu0 0.0
        %664 = vmatpush1.msra.mxu0 0.0
        %665 = vmatprep.subr.mxu0 0.0
        %666 = vmatpush1.msra.mxu0 0.0
        %667 = vmatprep.subr.mxu0 0.0
        %668 = vmatpush1.msra.mxu0 %v632
        %669 = vmatprep.subr.mxu0 0.0
        %670 = vmatpush2.msra.mxu0 0.0
        %671 = vmatprep.subr.mxu0 0.0
        %672 = vmatpush2.msra.mxu0 0.0
        %673 = vmatprep.subr.mxu0 0.0
        %674 = vmatpush2.msra.mxu0 0.0
        %675 = vmatprep.subr.mxu0 0.0
        %676 = vmatpush2.msra.mxu0 0.0
        %677 = vmatprep.subr.mxu0 0.0
        %678 = vmatpush2.msra.mxu0 0.0
        %679 = vmatprep.subr.mxu0 0.0
        %680 = vmatpush2.msra.mxu0 0.0
        %681 = vmatprep.subr.mxu0 0.0
        %682 = vmatpush2.msra.mxu0 0.0
        %683 = vmatprep.subr.mxu0 0.0
        %684 = vmatpush2.msra.mxu0 0.0
        %685 = vmatprep.subr.mxu0 0.0
        %686 = vmatpush2.msra.mxu0 0.0
        %687 = vmatprep.subr.mxu0 0.0
        %688 = vmatpush2.msra.mxu0 0.0
        %689 = vmatprep.subr.mxu0 0.0
        %690 = vmatpush2.msra.mxu0 0.0
        %691 = vmatprep.subr.mxu0 0.0
        %692 = vmatpush2.msra.mxu0 0.0
        %693 = vmatprep.subr.mxu0 0.0
        %694 = vmatpush2.msra.mxu0 0.0
        %695 = vmatprep.subr.mxu0 0.0
        %696 = vmatpush2.msra.mxu0 0.0
        %697 = vmatprep.subr.mxu0 0.0
        %698 = vmatpush2.msra.mxu0 0.0
        %699 = vmatprep.subr.mxu0 0.0
        %700 = vmatpush2.msra.mxu0 0.0
        %701 = vmatprep.mubr.f32.mxu0 0.0
        %702 = vmatmul.mubr.f32.gmra.mxu0 %v635
        %v703 = vpop.f32.mrf.mxu0
        %v704 = vadd.f32 0.0, %v703
        %v705 = vpop.f32.mrf.mxu0
        %706 = vdwg.mxu0
        %708 = vrot.lane.b32.xlu0 %v704, 8
        %v709 = vpop.permute.xlu0 %708
        %vm711 = vcmask 130112
        %712 = vst.msk [vmem:[#allocation3] sm:$0xff] %vm711, %v709
        %713 = vrot.lane.b32.xlu0 %v373, 112
        %v714 = vpop.permute.xlu0 %713
        %715 = vrot.lane.b32.xlu0 %v373, 80
        %v716 = vpop.permute.xlu0 %715
        %v717 = vsel %vm379, %v714, 0
        %v719 = vsel %vm379, %v716, 0
        %721 = vmatprep.subr.mxu0 0.0
        %722 = vmatpush1.xpose.msra.mxu0 0.0
        %723 = vmatprep.subr.mxu0 0.0
        %724 = vmatpush1.xpose.msra.mxu0 0.0
        %725 = vmatprep.subr.mxu0 0.0
        %726 = vmatpush1.xpose.msra.mxu0 0.0
        %727 = vmatprep.subr.mxu0 0.0
        %728 = vmatpush1.xpose.msra.mxu0 0.0
        %729 = vmatprep.subr.mxu0 0.0
        %730 = vmatpush1.xpose.msra.mxu0 0.0
        %731 = vmatprep.subr.mxu0 0.0
        %732 = vmatpush1.xpose.msra.mxu0 0.0
        %733 = vmatprep.subr.mxu0 0.0
        %734 = vmatpush1.xpose.msra.mxu0 0.0
        %735 = vmatprep.subr.mxu0 0.0
        %736 = vmatpush1.xpose.msra.mxu0 0.0
        %737 = vmatprep.subr.mxu0 0.0
        %738 = vmatpush1.xpose.msra.mxu0 0.0
        %739 = vmatprep.subr.mxu0 0.0
        %740 = vmatpush1.xpose.msra.mxu0 0.0
        %741 = vmatprep.subr.mxu0 0.0
        %742 = vmatpush1.xpose.msra.mxu0 0.0
        %743 = vmatprep.subr.mxu0 0.0
        %744 = vmatpush1.xpose.msra.mxu0 0.0
        %745 = vmatprep.subr.mxu0 0.0
        %746 = vmatpush1.xpose.msra.mxu0 0.0
        %747 = vmatprep.subr.mxu0 0.0
        %748 = vmatpush1.xpose.msra.mxu0 0.0
        %749 = vmatprep.subr.mxu0 0.0
        %750 = vmatpush1.xpose.msra.mxu0 0.0
        %751 = vmatprep.subr.mxu0 0.0
        %752 = vmatpush1.xpose.msra.mxu0 %v719
        %753 = vmatprep.subr.mxu0 0.0
        %754 = vmatpush2.xpose.msra.mxu0 0.0
        %755 = vmatprep.subr.mxu0 0.0
        %756 = vmatpush2.xpose.msra.mxu0 0.0
        %757 = vmatprep.subr.mxu0 0.0
        %758 = vmatpush2.xpose.msra.mxu0 0.0
        %759 = vmatprep.subr.mxu0 0.0
        %760 = vmatpush2.xpose.msra.mxu0 0.0
        %761 = vmatprep.subr.mxu0 0.0
        %762 = vmatpush2.xpose.msra.mxu0 0.0
        %763 = vmatprep.subr.mxu0 0.0
        %764 = vmatpush2.xpose.msra.mxu0 0.0
        %765 = vmatprep.subr.mxu0 0.0
        %766 = vmatpush2.xpose.msra.mxu0 0.0
        %767 = vmatprep.subr.mxu0 0.0
        %768 = vmatpush2.xpose.msra.mxu0 0.0
        %769 = vmatprep.subr.mxu0 0.0
        %770 = vmatpush2.xpose.msra.mxu0 0.0
        %771 = vmatprep.subr.mxu0 0.0
        %772 = vmatpush2.xpose.msra.mxu0 0.0
        %773 = vmatprep.subr.mxu0 0.0
        %774 = vmatpush2.xpose.msra.mxu0 0.0
        %775 = vmatprep.subr.mxu0 0.0
        %776 = vmatpush2.xpose.msra.mxu0 0.0
        %777 = vmatprep.subr.mxu0 0.0
        %778 = vmatpush2.xpose.msra.mxu0 0.0
        %779 = vmatprep.subr.mxu0 0.0
        %780 = vmatpush2.xpose.msra.mxu0 0.0
        %781 = vmatprep.subr.mxu0 0.0
        %782 = vmatpush2.xpose.msra.mxu0 0.0
        %783 = vmatprep.subr.mxu0 0.0
        %784 = vmatpush2.xpose.msra.mxu0 0.0
        %785 = vmatprep.mubr.f32.mxu0 0.0
        %786 = vmatmul.mubr.f32.gmra.mxu0 %v717
        %v787 = vpop.f32.mrf.mxu0
        %v788 = vadd.f32 0.0, %v787
        %v789 = vpop.f32.mrf.mxu0
        %790 = vdwg.mxu0
        %v791 = vsel %vm379, %v788, -inf
        %792 = vmax.xlane.f32.xlu0 %v791
        %v793 = vpop.xlane.xlu0 %792
        %v794 = vsub.f32 %v788, %v793
        %v795 = vmul.f32 %v794, 1.442695
        %v796 = vpow.pop %v795
        %v797 = vsel %vm379, %v796, 0.0
        %798 = vadd.xlane.f32.xlu0 %v797
        %v799 = vpop.xlane.xlu0 %798
        %v800 = vrcp.pop %v799
        %v801 = vmul.f32 %v796, %v800
        %802 = vrot.lane.b32.xlu0 %v373, 48
        %v803 = vpop.permute.xlu0 %802
        %v806 = vsel %vm379, %v801, 0
        %808 = vmatprep.subr.mxu0 0.0
        %809 = vmatpush1.msra.mxu0 0.0
        %810 = vmatprep.subr.mxu0 0.0
        %811 = vmatpush1.msra.mxu0 0.0
        %812 = vmatprep.subr.mxu0 0.0
        %813 = vmatpush1.msra.mxu0 0.0
        %814 = vmatprep.subr.mxu0 0.0
        %815 = vmatpush1.msra.mxu0 0.0
        %816 = vmatprep.subr.mxu0 0.0
        %817 = vmatpush1.msra.mxu0 0.0
        %818 = vmatprep.subr.mxu0 0.0
        %819 = vmatpush1.msra.mxu0 0.0
        %820 = vmatprep.subr.mxu0 0.0
        %821 = vmatpush1.msra.mxu0 0.0
        %822 = vmatprep.subr.mxu0 0.0
        %823 = vmatpush1.msra.mxu0 0.0
        %824 = vmatprep.subr.mxu0 0.0
        %825 = vmatpush1.msra.mxu0 0.0
        %826 = vmatprep.subr.mxu0 0.0
        %827 = vmatpush1.msra.mxu0 0.0
        %828 = vmatprep.subr.mxu0 0.0
        %829 = vmatpush1.msra.mxu0 0.0
        %830 = vmatprep.subr.mxu0 0.0
        %831 = vmatpush1.msra.mxu0 0.0
        %832 = vmatprep.subr.mxu0 0.0
        %833 = vmatpush1.msra.mxu0 0.0
        %834 = vmatprep.subr.mxu0 0.0
        %835 = vmatpush1.msra.mxu0 0.0
        %836 = vmatprep.subr.mxu0 0.0
        %837 = vmatpush1.msra.mxu0 0.0
        %838 = vmatprep.subr.mxu0 0.0
        %839 = vmatpush1.msra.mxu0 %v803
        %840 = vmatprep.subr.mxu0 0.0
        %841 = vmatpush2.msra.mxu0 0.0
        %842 = vmatprep.subr.mxu0 0.0
        %843 = vmatpush2.msra.mxu0 0.0
        %844 = vmatprep.subr.mxu0 0.0
        %845 = vmatpush2.msra.mxu0 0.0
        %846 = vmatprep.subr.mxu0 0.0
        %847 = vmatpush2.msra.mxu0 0.0
        %848 = vmatprep.subr.mxu0 0.0
        %849 = vmatpush2.msra.mxu0 0.0
        %850 = vmatprep.subr.mxu0 0.0
        %851 = vmatpush2.msra.mxu0 0.0
        %852 = vmatprep.subr.mxu0 0.0
        %853 = vmatpush2.msra.mxu0 0.0
        %854 = vmatprep.subr.mxu0 0.0
        %855 = vmatpush2.msra.mxu0 0.0
        %856 = vmatprep.subr.mxu0 0.0
        %857 = vmatpush2.msra.mxu0 0.0
        %858 = vmatprep.subr.mxu0 0.0
        %859 = vmatpush2.msra.mxu0 0.0
        %860 = vmatprep.subr.mxu0 0.0
        %861 = vmatpush2.msra.mxu0 0.0
        %862 = vmatprep.subr.mxu0 0.0
        %863 = vmatpush2.msra.mxu0 0.0
        %864 = vmatprep.subr.mxu0 0.0
        %865 = vmatpush2.msra.mxu0 0.0
        %866 = vmatprep.subr.mxu0 0.0
        %867 = vmatpush2.msra.mxu0 0.0
        %868 = vmatprep.subr.mxu0 0.0
        %869 = vmatpush2.msra.mxu0 0.0
        %870 = vmatprep.subr.mxu0 0.0
        %871 = vmatpush2.msra.mxu0 0.0
        %872 = vmatprep.mubr.f32.mxu0 0.0
        %873 = vmatmul.mubr.f32.gmra.mxu0 %v806
        %v874 = vpop.f32.mrf.mxu0
        %v875 = vadd.f32 0.0, %v874
        %v876 = vpop.f32.mrf.mxu0
        %877 = vdwg.mxu0
        %879 = vrot.lane.b32.xlu0 %v875, 16
        %v880 = vpop.permute.xlu0 %879
        %vm882 = vcmask 195712
        %883 = vst.msk [vmem:[#allocation3] sm:$0xff] %vm882, %v880
        %884 = vrot.lane.b32.xlu0 %v373, 104
        %v885 = vpop.permute.xlu0 %884
        %886 = vrot.lane.b32.xlu0 %v373, 72
        %v887 = vpop.permute.xlu0 %886
        %v888 = vsel %vm379, %v885, 0
        %v890 = vsel %vm379, %v887, 0
        %892 = vmatprep.subr.mxu0 0.0
        %893 = vmatpush1.xpose.msra.mxu0 0.0
        %894 = vmatprep.subr.mxu0 0.0
        %895 = vmatpush1.xpose.msra.mxu0 0.0
        %896 = vmatprep.subr.mxu0 0.0
        %897 = vmatpush1.xpose.msra.mxu0 0.0
        %898 = vmatprep.subr.mxu0 0.0
        %899 = vmatpush1.xpose.msra.mxu0 0.0
        %900 = vmatprep.subr.mxu0 0.0
        %901 = vmatpush1.xpose.msra.mxu0 0.0
        %902 = vmatprep.subr.mxu0 0.0
        %903 = vmatpush1.xpose.msra.mxu0 0.0
        %904 = vmatprep.subr.mxu0 0.0
        %905 = vmatpush1.xpose.msra.mxu0 0.0
        %906 = vmatprep.subr.mxu0 0.0
        %907 = vmatpush1.xpose.msra.mxu0 0.0
        %908 = vmatprep.subr.mxu0 0.0
        %909 = vmatpush1.xpose.msra.mxu0 0.0
        %910 = vmatprep.subr.mxu0 0.0
        %911 = vmatpush1.xpose.msra.mxu0 0.0
        %912 = vmatprep.subr.mxu0 0.0
        %913 = vmatpush1.xpose.msra.mxu0 0.0
        %914 = vmatprep.subr.mxu0 0.0
        %915 = vmatpush1.xpose.msra.mxu0 0.0
        %916 = vmatprep.subr.mxu0 0.0
        %917 = vmatpush1.xpose.msra.mxu0 0.0
        %918 = vmatprep.subr.mxu0 0.0
        %919 = vmatpush1.xpose.msra.mxu0 0.0
        %920 = vmatprep.subr.mxu0 0.0
        %921 = vmatpush1.xpose.msra.mxu0 0.0
        %922 = vmatprep.subr.mxu0 0.0
        %923 = vmatpush1.xpose.msra.mxu0 %v890
        %924 = vmatprep.subr.mxu0 0.0
        %925 = vmatpush2.xpose.msra.mxu0 0.0
        %926 = vmatprep.subr.mxu0 0.0
        %927 = vmatpush2.xpose.msra.mxu0 0.0
        %928 = vmatprep.subr.mxu0 0.0
        %929 = vmatpush2.xpose.msra.mxu0 0.0
        %930 = vmatprep.subr.mxu0 0.0
        %931 = vmatpush2.xpose.msra.mxu0 0.0
        %932 = vmatprep.subr.mxu0 0.0
        %933 = vmatpush2.xpose.msra.mxu0 0.0
        %934 = vmatprep.subr.mxu0 0.0
        %935 = vmatpush2.xpose.msra.mxu0 0.0
        %936 = vmatprep.subr.mxu0 0.0
        %937 = vmatpush2.xpose.msra.mxu0 0.0
        %938 = vmatprep.subr.mxu0 0.0
        %939 = vmatpush2.xpose.msra.mxu0 0.0
        %940 = vmatprep.subr.mxu0 0.0
        %941 = vmatpush2.xpose.msra.mxu0 0.0
        %942 = vmatprep.subr.mxu0 0.0
        %943 = vmatpush2.xpose.msra.mxu0 0.0
        %944 = vmatprep.subr.mxu0 0.0
        %945 = vmatpush2.xpose.msra.mxu0 0.0
        %946 = vmatprep.subr.mxu0 0.0
        %947 = vmatpush2.xpose.msra.mxu0 0.0
        %948 = vmatprep.subr.mxu0 0.0
        %949 = vmatpush2.xpose.msra.mxu0 0.0
        %950 = vmatprep.subr.mxu0 0.0
        %951 = vmatpush2.xpose.msra.mxu0 0.0
        %952 = vmatprep.subr.mxu0 0.0
        %953 = vmatpush2.xpose.msra.mxu0 0.0
        %954 = vmatprep.subr.mxu0 0.0
        %955 = vmatpush2.xpose.msra.mxu0 0.0
        %956 = vmatprep.mubr.f32.mxu0 0.0
        %957 = vmatmul.mubr.f32.gmra.mxu0 %v888
        %v958 = vpop.f32.mrf.mxu0
        %v959 = vadd.f32 0.0, %v958
        %v960 = vpop.f32.mrf.mxu0
        %961 = vdwg.mxu0
        %v962 = vsel %vm379, %v959, -inf
        %963 = vmax.xlane.f32.xlu0 %v962
        %v964 = vpop.xlane.xlu0 %963
        %v965 = vsub.f32 %v959, %v964
        %v966 = vmul.f32 %v965, 1.442695
        %v967 = vpow.pop %v966
        %v968 = vsel %vm379, %v967, 0.0
        %969 = vadd.xlane.f32.xlu0 %v968
        %v970 = vpop.xlane.xlu0 %969
        %v971 = vrcp.pop %v970
        %v972 = vmul.f32 %v967, %v971
        %973 = vrot.lane.b32.xlu0 %v373, 40
        %v974 = vpop.permute.xlu0 %973
        %v977 = vsel %vm379, %v972, 0
        %979 = vmatprep.subr.mxu0 0.0
        %980 = vmatpush1.msra.mxu0 0.0
        %981 = vmatprep.subr.mxu0 0.0
        %982 = vmatpush1.msra.mxu0 0.0
        %983 = vmatprep.subr.mxu0 0.0
        %984 = vmatpush1.msra.mxu0 0.0
        %985 = vmatprep.subr.mxu0 0.0
        %986 = vmatpush1.msra.mxu0 0.0
        %987 = vmatprep.subr.mxu0 0.0
        %988 = vmatpush1.msra.mxu0 0.0
        %989 = vmatprep.subr.mxu0 0.0
        %990 = vmatpush1.msra.mxu0 0.0
        %991 = vmatprep.subr.mxu0 0.0
        %992 = vmatpush1.msra.mxu0 0.0
        %993 = vmatprep.subr.mxu0 0.0
        %994 = vmatpush1.msra.mxu0 0.0
        %995 = vmatprep.subr.mxu0 0.0
        %996 = vmatpush1.msra.mxu0 0.0
        %997 = vmatprep.subr.mxu0 0.0
        %998 = vmatpush1.msra.mxu0 0.0
        %999 = vmatprep.subr.mxu0 0.0
        %1000 = vmatpush1.msra.mxu0 0.0
        %1001 = vmatprep.subr.mxu0 0.0
        %1002 = vmatpush1.msra.mxu0 0.0
        %1003 = vmatprep.subr.mxu0 0.0
        %1004 = vmatpush1.msra.mxu0 0.0
        %1005 = vmatprep.subr.mxu0 0.0
        %1006 = vmatpush1.msra.mxu0 0.0
        %1007 = vmatprep.subr.mxu0 0.0
        %1008 = vmatpush1.msra.mxu0 0.0
        %1009 = vmatprep.subr.mxu0 0.0
        %1010 = vmatpush1.msra.mxu0 %v974
        %1011 = vmatprep.subr.mxu0 0.0
        %1012 = vmatpush2.msra.mxu0 0.0
        %1013 = vmatprep.subr.mxu0 0.0
        %1014 = vmatpush2.msra.mxu0 0.0
        %1015 = vmatprep.subr.mxu0 0.0
        %1016 = vmatpush2.msra.mxu0 0.0
        %1017 = vmatprep.subr.mxu0 0.0
        %1018 = vmatpush2.msra.mxu0 0.0
        %1019 = vmatprep.subr.mxu0 0.0
        %1020 = vmatpush2.msra.mxu0 0.0
        %1021 = vmatprep.subr.mxu0 0.0
        %1022 = vmatpush2.msra.mxu0 0.0
        %1023 = vmatprep.subr.mxu0 0.0
        %1024 = vmatpush2.msra.mxu0 0.0
        %1025 = vmatprep.subr.mxu0 0.0
        %1026 = vmatpush2.msra.mxu0 0.0
        %1027 = vmatprep.subr.mxu0 0.0
        %1028 = vmatpush2.msra.mxu0 0.0
        %1029 = vmatprep.subr.mxu0 0.0
        %1030 = vmatpush2.msra.mxu0 0.0
        %1031 = vmatprep.subr.mxu0 0.0
        %1032 = vmatpush2.msra.mxu0 0.0
        %1033 = vmatprep.subr.mxu0 0.0
        %1034 = vmatpush2.msra.mxu0 0.0
        %1035 = vmatprep.subr.mxu0 0.0
        %1036 = vmatpush2.msra.mxu0 0.0
        %1037 = vmatprep.subr.mxu0 0.0
        %1038 = vmatpush2.msra.mxu0 0.0
        %1039 = vmatprep.subr.mxu0 0.0
        %1040 = vmatpush2.msra.mxu0 0.0
        %1041 = vmatprep.subr.mxu0 0.0
        %1042 = vmatpush2.msra.mxu0 0.0
        %1043 = vmatprep.mubr.f32.mxu0 0.0
        %1044 = vmatmul.mubr.f32.gmra.mxu0 %v977
        %v1045 = vpop.f32.mrf.mxu0
        %v1046 = vadd.f32 0.0, %v1045
        %v1047 = vpop.f32.mrf.mxu0
        %1048 = vdwg.mxu0
        %1050 = vrot.lane.b32.xlu0 %v1046, 24
        %v1051 = vpop.permute.xlu0 %1050
        %vm1053 = vcmask 261312
        %1054 = vst.msk [vmem:[#allocation3] sm:$0xff] %vm1053, %v1051
        %v1055 = vld [vmem:[#allocation2] sm:$0xff]
        %v1056 = vld [vmem:[#allocation3] sm:$0xff]
        %s1057 = scalar_lea.vmem [#allocation9], %s288
        %v1058 = vld [vmem:[%s1057] sm:$0xff]
        %v1059 = vld [vmem:[%s1057 + $0x8] sm:$0xff]
        %v1060 = vld [vmem:[%s1057 + $0x10] sm:$0xff]
        %v1061 = vld [vmem:[%s1057 + $0x18] sm:$0xff]
        %v1063 = vsel %vm302, %v1056, 0
        %1065 = vmatprep.subr.mxu0 0.0
        %1066 = vmatpush1.msra.mxu0 0.0
        %1067 = vmatprep.subr.mxu0 0.0
        %1068 = vmatpush1.msra.mxu0 0.0
        %1069 = vmatprep.subr.mxu0 0.0
        %1070 = vmatpush1.msra.mxu0 0.0
        %1071 = vmatprep.subr.mxu0 0.0
        %1072 = vmatpush1.msra.mxu0 0.0
        %1073 = vmatprep.subr.mxu0 0.0
        %1074 = vmatpush1.msra.mxu0 0.0
        %1075 = vmatprep.subr.mxu0 0.0
        %1076 = vmatpush1.msra.mxu0 0.0
        %1077 = vmatprep.subr.mxu0 0.0
        %1078 = vmatpush1.msra.mxu0 0.0
        %1079 = vmatprep.subr.mxu0 0.0
        %1080 = vmatpush1.msra.mxu0 0.0
        %1081 = vmatprep.subr.mxu0 0.0
        %1082 = vmatpush1.msra.mxu0 0.0
        %1083 = vmatprep.subr.mxu0 0.0
        %1084 = vmatpush1.msra.mxu0 0.0
        %1085 = vmatprep.subr.mxu0 0.0
        %1086 = vmatpush1.msra.mxu0 0.0
        %1087 = vmatprep.subr.mxu0 0.0
        %1088 = vmatpush1.msra.mxu0 0.0
        %1089 = vmatprep.subr.mxu0 0.0
        %1090 = vmatpush1.msra.mxu0 %v1061
        %1091 = vmatprep.subr.mxu0 0.0
        %1092 = vmatpush1.msra.mxu0 %v1060
        %1093 = vmatprep.subr.mxu0 0.0
        %1094 = vmatpush1.msra.mxu0 %v1059
        %1095 = vmatprep.subr.mxu0 0.0
        %1096 = vmatpush1.msra.mxu0 %v1058
        %1097 = vmatprep.subr.mxu0 0.0
        %1098 = vmatpush2.msra.mxu0 0.0
        %1099 = vmatprep.subr.mxu0 0.0
        %1100 = vmatpush2.msra.mxu0 0.0
        %1101 = vmatprep.subr.mxu0 0.0
        %1102 = vmatpush2.msra.mxu0 0.0
        %1103 = vmatprep.subr.mxu0 0.0
        %1104 = vmatpush2.msra.mxu0 0.0
        %1105 = vmatprep.subr.mxu0 0.0
        %1106 = vmatpush2.msra.mxu0 0.0
        %1107 = vmatprep.subr.mxu0 0.0
        %1108 = vmatpush2.msra.mxu0 0.0
        %1109 = vmatprep.subr.mxu0 0.0
        %1110 = vmatpush2.msra.mxu0 0.0
        %1111 = vmatprep.subr.mxu0 0.0
        %1112 = vmatpush2.msra.mxu0 0.0
        %1113 = vmatprep.subr.mxu0 0.0
        %1114 = vmatpush2.msra.mxu0 0.0
        %1115 = vmatprep.subr.mxu0 0.0
        %1116 = vmatpush2.msra.mxu0 0.0
        %1117 = vmatprep.subr.mxu0 0.0
        %1118 = vmatpush2.msra.mxu0 0.0
        %1119 = vmatprep.subr.mxu0 0.0
        %1120 = vmatpush2.msra.mxu0 0.0
        %1121 = vmatprep.subr.mxu0 0.0
        %1122 = vmatpush2.msra.mxu0 0.0
        %1123 = vmatprep.subr.mxu0 0.0
        %1124 = vmatpush2.msra.mxu0 0.0
        %1125 = vmatprep.subr.mxu0 0.0
        %1126 = vmatpush2.msra.mxu0 0.0
        %1127 = vmatprep.subr.mxu0 0.0
        %1128 = vmatpush2.msra.mxu0 0.0
        %1129 = vmatprep.mubr.f32.mxu0 0.0
        %1130 = vmatmul.mubr.f32.gmra.mxu0 %v1063
        %v1131 = vpop.f32.mrf.mxu0
        %v1132 = vadd.f32 0.0, %v1131
        %v1133 = vpop.f32.mrf.mxu0
        %1134 = vdwg.mxu0
        %v1135 = vadd.f32 %v1055, %v1132
        %1136 = vst.msk [vmem:[#allocation2] sm:$0xff] %vm302, %v1135
        // Predicated region
        $region57: #{tpu_custom_call.1} parent=39 // pred_check
          %p1137 = pneg %p281
        $region58: #{tpu_custom_call.1} parent=39 // pred_check_branch
          %1139 = sbr.rel (%p1137) target = $region60
        $region59: #{tpu_custom_call.1} parent=39 // pred_region
          %v1140 = vld [vmem:[#allocation2] sm:$0xff]
          %v1141 = vld [vmem:[%s4] sm:$0x1]
          %v1143 = vlaneseq
          %v1144 = vshrl.u32 %v1143, 7
          %v1145 = vsub.s32 0, %v1144
          %v1146 = vrot.slane %v1141, %v1145
          %v1148 = vadd.f32 %v1140, %v1146
          %1149 = vst.msk [vmem:[%s280] sm:$0xff] %vm302, %v1148
        $region60: #{tpu_custom_call.1} parent=39 // pred_fallthru
          _
        %s1150 = sand.u32 %s153, 1
        %s1151 = scalar_lea.sflag [#allocation6], %s1150
        %s1152 = sand.u32 %s153, 1
        %s1153 = smul.addr %s1152, 8
        %s1154 = scalar_lea.vmem [#allocation10], %s1153
        // Predicated region
        $region61: #{tpu_custom_call.1} parent=39 // pred_check
          %p1155 = pneg %p163
        $region62: #{tpu_custom_call.1} parent=39 // pred_check_branch
          %1157 = sbr.rel (%p1155) target = $region64
        $region63: #{tpu_custom_call.1} parent=39 // pred_region
          %s1159 = ssub.s32 128, 128
          %1160 = vsyncadd %s1151, %s1159
          %s1161 = smul.addr %s27, 128
          %s1162 = scalar_lea.hbm %s5, %s1161
          %s1164 = sshll.u32 %s1154, 4
          %s1165 = int_to_ptr.vmem [resolvable:$true] %s1164
          %1167 = dma.vmem_to_hbm [thread:$0]  %s1165, 128, %s1162, %s1151
        $region64: #{tpu_custom_call.1} parent=39 // pred_fallthru
          _
      $region40: #{tpu_custom_call.1} parent=5 // pred_fallthru
        _
      %p1168 = scmp.le.s32.totalorder 2, %s18
      // Predicated region
      $region65: #{tpu_custom_call.1} parent=5 // pred_check
        %p1169 = pneg %p1168
      $region66: #{tpu_custom_call.1} parent=5 // pred_check_branch
        %1171 = sbr.rel (%p1169) target = $region68
      $region67: #{tpu_custom_call.1} parent=5 // pred_region
        %s1172 = ssub.s32 %s18, 2
        // Predicated region
        $region69: #{tpu_custom_call.1} parent=67 // pred_check
          %p1173 = pneg %p169
        $region70: #{tpu_custom_call.1} parent=67 // pred_check_branch
          %1175 = sbr.rel (%p1173) target = $region72
        $region71: #{tpu_custom_call.1} parent=67 // pred_region
          %s1176 = sand.u32 %s154, 1
          %s1177 = scalar_lea.sflag [#allocation6], %s1176
          %s1178 = sand.u32 %s154, 1
          %s1179 = smul.addr %s1178, 8
          %s1180 = scalar_lea.vmem [#allocation10], %s1179
          %1181 = dma.done %s1177, 128
        $region72: #{tpu_custom_call.1} parent=67 // pred_fallthru
          _
      $region68: #{tpu_custom_call.1} parent=5 // pred_fallthru
        _
    $region6: #{tpu_custom_call.1} parent=1 // loop_footer
      %s22 = sadd.s32 1, %s18
    $region7: #{tpu_custom_call.1} parent=1 // loop_footer_branch
      %17 = sbr.rel target = $region3
    $region8: #{tpu_custom_call.1} parent=1 // loop_exit
      _
    %1182 = vsyncpa [#allocation5], 1
    %s1183 = scalar_lea.sflag [#allocation5], 1
    %1184 = vsyncpa %s1183, 1
    %1185 = vsyncpa [#allocation8], 1
    %1186 = vsyncpa [#allocation6], 1
    %s1187 = scalar_lea.sflag [#allocation6], 1
    %1188 = vsyncpa %s1187, 1

</llo_original>
